<compile_context>
chip_gen: v5e
topology: v5e:2x2
jax: 0.10.0
libtpu: 0.0.40
codegen_flags: <defaults>
</compile_context>

<pallas_src>
import jax
import jax.numpy as jnp
from jax import lax
from jax.experimental import pallas as pl
from jax.experimental.pallas import tpu as pltpu


MAX_TOKENS_PER_STEP = 256          # rows gathered per grid step
DMA_WINDOW = 16                    # row copies kept in flight inside a step
MAX_OUT_BLOCK_BYTES = 4 << 20      # cap on one output block (x2 double-buffered)
RESIDENT_TABLE_BYTES = 12 << 20    # table <= this -> keep resident in VMEM
                                   # (x2 input double buffer => <= 24 MiB,
                                   #  safe within v7x's 64 MiB physical VMEM)


def _round_up(x, m):
    return (x + m - 1) // m * m


def _gather_rows_kernel(ids_ref, table_ref, out_ref, sems):
    """out[r, :] = table[ids[base + r], :] for r in [0, tile).

    ids_ref:   (t_pad,)  int32  SMEM (scalar prefetch; addressing data only)
    table_ref: (V, D)           HBM (pl.ANY) or VMEM-resident block
    out_ref:   (tile, D)        VMEM output block -- rows DMA'd straight in
    sems:      (W,)             DMA semaphores (rolling in-flight window)
    """
    tile = out_ref.shape[0]
    window = sems.shape[0]
    base = pl.program_id(0) * tile

    def issue(r):
        tok = ids_ref[base + r]
        pltpu.make_async_copy(
            table_ref.at[tok], out_ref.at[r], sems.at[r % window]
        ).start()

    # Prologue: put `window` row copies in flight so HBM latency is overlapped.
    for r in range(window):            # static, small (<= 16)
        issue(r)

    def body(r, carry):
        # Wait for row r (table_ref.at[0] has the same row shape), then reuse
        # its semaphore slot to issue row r + window.
        pltpu.make_async_copy(
            table_ref.at[0], out_ref.at[r], sems.at[r % window]
        ).wait()

        @pl.when(r + window < tile)
        def _():
            issue(r + window)

        return carry

    lax.fori_loop(0, tile, body, 0)
    # NOTE: pad rows on the tail tile gather row 0 (valid); wasted bandwidth is
    # at most one partial tile.


def embedding_lookup(ids_flat, table, *, force_hbm_table=False):
    """ids_flat: (T,) integer ids, table: (V, D) -> (T, D) row gather."""
    T = int(ids_flat.shape[0])
    V, D = table.shape
    itemsize = jnp.dtype(table.dtype).itemsize
    row_bytes = D * itemsize

    # Clamp ids so a bad id can never become an out-of-bounds DMA.
    # (PyTorch would error on out-of-range ids; we clamp -- documented.)
    ids = jnp.clip(ids_flat.astype(jnp.int32), 0, V - 1)

    # --- token-tile sizing ---------------------------------------------------
    # Big tiles amortize the ~0.35us/grid-step overhead and keep many row DMAs
    # in flight; cap block bytes so double-buffered output blocks fit VMEM on
    # every generation (v7x has only 64 MiB physical VMEM).
    tile = min(MAX_TOKENS_PER_STEP, max(8, MAX_OUT_BLOCK_BYTES // row_bytes))
    tile = max(8, (tile // 8) * 8)               # sublane-aligned
    tile = min(tile, _round_up(T, 8))            # don't tile past the tokens
    n_steps = -(-T // tile)
    t_pad = n_steps * tile
    if t_pad != T:
        ids = jnp.concatenate([ids, jnp.zeros((t_pad - T,), jnp.int32)])

    window = min(DMA_WINDOW, tile)

    # --- table placement -----------------------------------------------------
    table_bytes = V * D * itemsize
    resident = (table_bytes <= RESIDENT_TABLE_BYTES) and not force_hbm_table
    if resident:
        # Whole table pipelined into VMEM once (constant block index) ->
        # per-row copies are cheap local VMEM->VMEM DMAs.
        table_spec = pl.BlockSpec((V, D), lambda i, ids_sref: (0, 0))
    else:
        # Table stays in HBM; only referenced rows are DMA'd.
        table_spec = pl.BlockSpec(memory_space=pl.ANY)

    out_block_bytes = tile * row_bytes
    vmem_need = 2 * out_block_bytes + (2 * table_bytes if resident else 0)
    vmem_limit = int(min(48 << 20, max(vmem_need + (4 << 20), 16 << 20)))

    out = pl.pallas_call(
        _gather_rows_kernel,
        out_shape=jax.ShapeDtypeStruct((t_pad, D), table.dtype),
        grid_spec=pltpu.PrefetchScalarGridSpec(
            num_scalar_prefetch=1,                       # ids -> SMEM
            grid=(n_steps,),
            in_specs=[table_spec],
            out_specs=pl.BlockSpec((tile, D), lambda i, ids_sref: (i, 0)),
            scratch_shapes=[pltpu.SemaphoreType.DMA((window,))],
        ),
        compiler_params=pltpu.CompilerParams(
            dimension_semantics=("parallel",),           # token tiles independent
            vmem_limit_bytes=vmem_limit,
        ),
        cost_estimate=pl.CostEstimate(
            flops=0,
            transcendentals=0,
            bytes_accessed=2 * t_pad * D * itemsize + t_pad * 4,
        ),
    )(ids, table)

    if t_pad != T:
        out = out[:T]   # TODO(synk): callers that pre-pad tokens avoid this copy
    return out


class MyModelPallas:
    """JAX/Pallas equivalent of MyModel: holds pretrained word embeddings."""

    def __init__(self, word_embeddings, dtype=None):
        # nn.Embedding.from_pretrained(..., freeze=False, padding_idx=0):
        # forward semantics are a plain row gather (padding_idx only affects
        # gradients, not the forward value).
        # Passing dtype=jnp.bfloat16 halves HBM traffic for this purely
        # bandwidth-bound gather; default keeps the pretrained dtype so the
        # forward bit-matches the reference.
        emb = jnp.asarray(word_embeddings)
        if dtype is not None:
            emb = emb.astype(dtype)
        self.word_embeddings = emb

    def forward(self, batch):
        # PyTorch forward is `pass`; we expose the lookup the module implies.
        # NOTE: for tiny token counts a plain jnp.take would beat kernel launch
        #       overhead; the Pallas path is what scales.
        b, s = batch.shape
        d = self.word_embeddings.shape[1]
        out = embedding_lookup(batch.reshape(-1), self.word_embeddings)
        return out.reshape(b, s, d)

    __call__ = forward


if __name__ == "__main__":
    key = jax.random.PRNGKey(0)
    k_emb, k_ids = jax.random.split(key)

    VOCAB = 32        # vocab size (row 0 is the padding_idx row)
    EMBED_DIM = 128   # lane-aligned embedding width
    BATCH, SEQ = 2, 8

    # Deterministic "pretrained" word embeddings.
    word_embeddings = jax.random.normal(k_emb, (VOCAB, EMBED_DIM), dtype=jnp.float32)

    # Deterministic token-id batch (includes some padding_idx=0 tokens).
    batch = jax.random.randint(
        k_ids, (BATCH, SEQ), minval=0, maxval=VOCAB, dtype=jnp.int32
    )

    model = MyModelPallas(word_embeddings)
    out = jax.block_until_ready(model(batch))

    # Reference check: plain JAX gather.
    ref = word_embeddings[batch]
    assert out.shape == (BATCH, SEQ, EMBED_DIM)
    assert jnp.allclose(out, ref, atol=1e-6), "mismatch (VMEM-resident path)"

    # Also exercise the HBM-table (large-vocab) path of the same kernel.
    out_hbm = jax.block_until_ready(
        embedding_lookup(batch.reshape(-1), word_embeddings, force_hbm_table=True)
    )
    assert jnp.allclose(
        out_hbm.reshape(BATCH, SEQ, EMBED_DIM), ref, atol=1e-6
    ), "mismatch (HBM-table path)"

    print("KERNEL_OK")
</pallas_src>

<mosaic_0001>
module attributes {stable_mosaic.version = 11 : i64} {
  func.func @_gather_rows_kernel(%arg0: i32, %arg1: memref<16xi32, #tpu.memory_space<smem>>, %arg2: memref<32x128xf32, #tpu.memory_space<vmem>>, %arg3: memref<16x128xf32, #tpu.memory_space<vmem>>, %arg4: memref<16x!tpu.dma_semaphore, #tpu.memory_space<semaphore_mem>>) attributes {dimension_semantics = [#tpu.dimension_semantics<parallel>], iteration_bounds = array<i64: 1>, scalar_prefetch = 1 : i64, scratch_operands = 1 : i64, tpu.core_type = #tpu.core_type<tc>, window_params = [{pipeline_mode = #tpu.pipeline_mode<synchronous>, transform_indices = @transform_0, window_bounds = array<i64: 32, 128>}, {transform_indices = @transform_1, window_bounds = array<i64: 16, 128>}]} {
    %c16_i32 = arith.constant 16 : i32
    %0 = arith.muli %arg0, %c16_i32 : i32
    %c0_i32 = arith.constant 0 : i32
    %1 = arith.addi %0, %c0_i32 : i32
    %2 = arith.index_cast %1 : i32 to index
    %3 = memref.load %arg1[%2] : memref<16xi32, #tpu.memory_space<smem>>
    %c0_i32_0 = arith.constant 0 : i32
    %c0_i32_1 = arith.constant 0 : i32
    %c0_i32_2 = arith.constant 0 : i32
    %4 = tpu.memref_slice %arg2[%3, %c0_i32_2] : memref<32x128xf32, #tpu.memory_space<vmem>> -> memref<1x128xf32, #tpu.memory_space<vmem>>
    %5 = tpu.memref_squeeze %4 : memref<1x128xf32, #tpu.memory_space<vmem>> -> memref<128xf32, #tpu.memory_space<vmem>>
    %c0_i32_3 = arith.constant 0 : i32
    %6 = tpu.memref_slice %arg3[%c0_i32_0, %c0_i32_3] : memref<16x128xf32, #tpu.memory_space<vmem>> -> memref<1x128xf32, #tpu.memory_space<vmem>>
    %7 = tpu.memref_squeeze %6 : memref<1x128xf32, #tpu.memory_space<vmem>> -> memref<128xf32, #tpu.memory_space<vmem>>
    %8 = tpu.memref_slice %arg4[%c0_i32_1] : memref<16x!tpu.dma_semaphore, #tpu.memory_space<semaphore_mem>> -> memref<1x!tpu.dma_semaphore, #tpu.memory_space<semaphore_mem>>
    %9 = tpu.memref_squeeze %8 : memref<1x!tpu.dma_semaphore, #tpu.memory_space<semaphore_mem>> -> memref<!tpu.dma_semaphore, #tpu.memory_space<semaphore_mem>>
    tpu.enqueue_dma source(%5 : memref<128xf32, #tpu.memory_space<vmem>>) target(%7 : memref<128xf32, #tpu.memory_space<vmem>>) target_semaphore(%9 : memref<!tpu.dma_semaphore, #tpu.memory_space<semaphore_mem>>)
    %c1_i32 = arith.constant 1 : i32
    %10 = arith.addi %0, %c1_i32 : i32
    %11 = arith.index_cast %10 : i32 to index
    %12 = memref.load %arg1[%11] : memref<16xi32, #tpu.memory_space<smem>>
    %c1_i32_4 = arith.constant 1 : i32
    %c1_i32_5 = arith.constant 1 : i32
    %c0_i32_6 = arith.constant 0 : i32
    %13 = tpu.memref_slice %arg2[%12, %c0_i32_6] : memref<32x128xf32, #tpu.memory_space<vmem>> -> memref<1x128xf32, #tpu.memory_space<vmem>>
    %14 = tpu.memref_squeeze %13 : memref<1x128xf32, #tpu.memory_space<vmem>> -> memref<128xf32, #tpu.memory_space<vmem>>
    %c0_i32_7 = arith.constant 0 : i32
    %15 = tpu.memref_slice %arg3[%c1_i32_4, %c0_i32_7] : memref<16x128xf32, #tpu.memory_space<vmem>> -> memref<1x128xf32, #tpu.memory_space<vmem>>
    %16 = tpu.memref_squeeze %15 : memref<1x128xf32, #tpu.memory_space<vmem>> -> memref<128xf32, #tpu.memory_space<vmem>>
    %17 = tpu.memref_slice %arg4[%c1_i32_5] : memref<16x!tpu.dma_semaphore, #tpu.memory_space<semaphore_mem>> -> memref<1x!tpu.dma_semaphore, #tpu.memory_space<semaphore_mem>>
    %18 = tpu.memref_squeeze %17 : memref<1x!tpu.dma_semaphore, #tpu.memory_space<semaphore_mem>> -> memref<!tpu.dma_semaphore, #tpu.memory_space<semaphore_mem>>
    tpu.enqueue_dma source(%14 : memref<128xf32, #tpu.memory_space<vmem>>) target(%16 : memref<128xf32, #tpu.memory_space<vmem>>) target_semaphore(%18 : memref<!tpu.dma_semaphore, #tpu.memory_space<semaphore_mem>>)
    %c2_i32 = arith.constant 2 : i32
    %19 = arith.addi %0, %c2_i32 : i32
    %20 = arith.index_cast %19 : i32 to index
    %21 = memref.load %arg1[%20] : memref<16xi32, #tpu.memory_space<smem>>
    %c2_i32_8 = arith.constant 2 : i32
    %c2_i32_9 = arith.constant 2 : i32
    %c0_i32_10 = arith.constant 0 : i32
    %22 = tpu.memref_slice %arg2[%21, %c0_i32_10] : memref<32x128xf32, #tpu.memory_space<vmem>> -> memref<1x128xf32, #tpu.memory_space<vmem>>
    %23 = tpu.memref_squeeze %22 : memref<1x128xf32, #tpu.memory_space<vmem>> -> memref<128xf32, #tpu.memory_space<vmem>>
    %c0_i32_11 = arith.constant 0 : i32
    %24 = tpu.memref_slice %arg3[%c2_i32_8, %c0_i32_11] : memref<16x128xf32, #tpu.memory_space<vmem>> -> memref<1x128xf32, #tpu.memory_space<vmem>>
    %25 = tpu.memref_squeeze %24 : memref<1x128xf32, #tpu.memory_space<vmem>> -> memref<128xf32, #tpu.memory_space<vmem>>
    %26 = tpu.memref_slice %arg4[%c2_i32_9] : memref<16x!tpu.dma_semaphore, #tpu.memory_space<semaphore_mem>> -> memref<1x!tpu.dma_semaphore, #tpu.memory_space<semaphore_mem>>
    %27 = tpu.memref_squeeze %26 : memref<1x!tpu.dma_semaphore, #tpu.memory_space<semaphore_mem>> -> memref<!tpu.dma_semaphore, #tpu.memory_space<semaphore_mem>>
    tpu.enqueue_dma source(%23 : memref<128xf32, #tpu.memory_space<vmem>>) target(%25 : memref<128xf32, #tpu.memory_space<vmem>>) target_semaphore(%27 : memref<!tpu.dma_semaphore, #tpu.memory_space<semaphore_mem>>)
    %c3_i32 = arith.constant 3 : i32
    %28 = arith.addi %0, %c3_i32 : i32
    %29 = arith.index_cast %28 : i32 to index
    %30 = memref.load %arg1[%29] : memref<16xi32, #tpu.memory_space<smem>>
    %c3_i32_12 = arith.constant 3 : i32
    %c3_i32_13 = arith.constant 3 : i32
    %c0_i32_14 = arith.constant 0 : i32
    %31 = tpu.memref_slice %arg2[%30, %c0_i32_14] : memref<32x128xf32, #tpu.memory_space<vmem>> -> memref<1x128xf32, #tpu.memory_space<vmem>>
    %32 = tpu.memref_squeeze %31 : memref<1x128xf32, #tpu.memory_space<vmem>> -> memref<128xf32, #tpu.memory_space<vmem>>
    %c0_i32_15 = arith.constant 0 : i32
    %33 = tpu.memref_slice %arg3[%c3_i32_12, %c0_i32_15] : memref<16x128xf32, #tpu.memory_space<vmem>> -> memref<1x128xf32, #tpu.memory_space<vmem>>
    %34 = tpu.memref_squeeze %33 : memref<1x128xf32, #tpu.memory_space<vmem>> -> memref<128xf32, #tpu.memory_space<vmem>>
    %35 = tpu.memref_slice %arg4[%c3_i32_13] : memref<16x!tpu.dma_semaphore, #tpu.memory_space<semaphore_mem>> -> memref<1x!tpu.dma_semaphore, #tpu.memory_space<semaphore_mem>>
    %36 = tpu.memref_squeeze %35 : memref<1x!tpu.dma_semaphore, #tpu.memory_space<semaphore_mem>> -> memref<!tpu.dma_semaphore, #tpu.memory_space<semaphore_mem>>
    tpu.enqueue_dma source(%32 : memref<128xf32, #tpu.memory_space<vmem>>) target(%34 : memref<128xf32, #tpu.memory_space<vmem>>) target_semaphore(%36 : memref<!tpu.dma_semaphore, #tpu.memory_space<semaphore_mem>>)
    %c4_i32 = arith.constant 4 : i32
    %37 = arith.addi %0, %c4_i32 : i32
    %38 = arith.index_cast %37 : i32 to index
    %39 = memref.load %arg1[%38] : memref<16xi32, #tpu.memory_space<smem>>
    %c4_i32_16 = arith.constant 4 : i32
    %c4_i32_17 = arith.constant 4 : i32
    %c0_i32_18 = arith.constant 0 : i32
    %40 = tpu.memref_slice %arg2[%39, %c0_i32_18] : memref<32x128xf32, #tpu.memory_space<vmem>> -> memref<1x128xf32, #tpu.memory_space<vmem>>
    %41 = tpu.memref_squeeze %40 : memref<1x128xf32, #tpu.memory_space<vmem>> -> memref<128xf32, #tpu.memory_space<vmem>>
    %c0_i32_19 = arith.constant 0 : i32
    %42 = tpu.memref_slice %arg3[%c4_i32_16, %c0_i32_19] : memref<16x128xf32, #tpu.memory_space<vmem>> -> memref<1x128xf32, #tpu.memory_space<vmem>>
    %43 = tpu.memref_squeeze %42 : memref<1x128xf32, #tpu.memory_space<vmem>> -> memref<128xf32, #tpu.memory_space<vmem>>
    %44 = tpu.memref_slice %arg4[%c4_i32_17] : memref<16x!tpu.dma_semaphore, #tpu.memory_space<semaphore_mem>> -> memref<1x!tpu.dma_semaphore, #tpu.memory_space<semaphore_mem>>
    %45 = tpu.memref_squeeze %44 : memref<1x!tpu.dma_semaphore, #tpu.memory_space<semaphore_mem>> -> memref<!tpu.dma_semaphore, #tpu.memory_space<semaphore_mem>>
    tpu.enqueue_dma source(%41 : memref<128xf32, #tpu.memory_space<vmem>>) target(%43 : memref<128xf32, #tpu.memory_space<vmem>>) target_semaphore(%45 : memref<!tpu.dma_semaphore, #tpu.memory_space<semaphore_mem>>)
    %c5_i32 = arith.constant 5 : i32
    %46 = arith.addi %0, %c5_i32 : i32
    %47 = arith.index_cast %46 : i32 to index
    %48 = memref.load %arg1[%47] : memref<16xi32, #tpu.memory_space<smem>>
    %c5_i32_20 = arith.constant 5 : i32
    %c5_i32_21 = arith.constant 5 : i32
    %c0_i32_22 = arith.constant 0 : i32
    %49 = tpu.memref_slice %arg2[%48, %c0_i32_22] : memref<32x128xf32, #tpu.memory_space<vmem>> -> memref<1x128xf32, #tpu.memory_space<vmem>>
    %50 = tpu.memref_squeeze %49 : memref<1x128xf32, #tpu.memory_space<vmem>> -> memref<128xf32, #tpu.memory_space<vmem>>
    %c0_i32_23 = arith.constant 0 : i32
    %51 = tpu.memref_slice %arg3[%c5_i32_20, %c0_i32_23] : memref<16x128xf32, #tpu.memory_space<vmem>> -> memref<1x128xf32, #tpu.memory_space<vmem>>
    %52 = tpu.memref_squeeze %51 : memref<1x128xf32, #tpu.memory_space<vmem>> -> memref<128xf32, #tpu.memory_space<vmem>>
    %53 = tpu.memref_slice %arg4[%c5_i32_21] : memref<16x!tpu.dma_semaphore, #tpu.memory_space<semaphore_mem>> -> memref<1x!tpu.dma_semaphore, #tpu.memory_space<semaphore_mem>>
    %54 = tpu.memref_squeeze %53 : memref<1x!tpu.dma_semaphore, #tpu.memory_space<semaphore_mem>> -> memref<!tpu.dma_semaphore, #tpu.memory_space<semaphore_mem>>
    tpu.enqueue_dma source(%50 : memref<128xf32, #tpu.memory_space<vmem>>) target(%52 : memref<128xf32, #tpu.memory_space<vmem>>) target_semaphore(%54 : memref<!tpu.dma_semaphore, #tpu.memory_space<semaphore_mem>>)
    %c6_i32 = arith.constant 6 : i32
    %55 = arith.addi %0, %c6_i32 : i32
    %56 = arith.index_cast %55 : i32 to index
    %57 = memref.load %arg1[%56] : memref<16xi32, #tpu.memory_space<smem>>
    %c6_i32_24 = arith.constant 6 : i32
    %c6_i32_25 = arith.constant 6 : i32
    %c0_i32_26 = arith.constant 0 : i32
    %58 = tpu.memref_slice %arg2[%57, %c0_i32_26] : memref<32x128xf32, #tpu.memory_space<vmem>> -> memref<1x128xf32, #tpu.memory_space<vmem>>
    %59 = tpu.memref_squeeze %58 : memref<1x128xf32, #tpu.memory_space<vmem>> -> memref<128xf32, #tpu.memory_space<vmem>>
    %c0_i32_27 = arith.constant 0 : i32
    %60 = tpu.memref_slice %arg3[%c6_i32_24, %c0_i32_27] : memref<16x128xf32, #tpu.memory_space<vmem>> -> memref<1x128xf32, #tpu.memory_space<vmem>>
    %61 = tpu.memref_squeeze %60 : memref<1x128xf32, #tpu.memory_space<vmem>> -> memref<128xf32, #tpu.memory_space<vmem>>
    %62 = tpu.memref_slice %arg4[%c6_i32_25] : memref<16x!tpu.dma_semaphore, #tpu.memory_space<semaphore_mem>> -> memref<1x!tpu.dma_semaphore, #tpu.memory_space<semaphore_mem>>
    %63 = tpu.memref_squeeze %62 : memref<1x!tpu.dma_semaphore, #tpu.memory_space<semaphore_mem>> -> memref<!tpu.dma_semaphore, #tpu.memory_space<semaphore_mem>>
    tpu.enqueue_dma source(%59 : memref<128xf32, #tpu.memory_space<vmem>>) target(%61 : memref<128xf32, #tpu.memory_space<vmem>>) target_semaphore(%63 : memref<!tpu.dma_semaphore, #tpu.memory_space<semaphore_mem>>)
    %c7_i32 = arith.constant 7 : i32
    %64 = arith.addi %0, %c7_i32 : i32
    %65 = arith.index_cast %64 : i32 to index
    %66 = memref.load %arg1[%65] : memref<16xi32, #tpu.memory_space<smem>>
    %c7_i32_28 = arith.constant 7 : i32
    %c7_i32_29 = arith.constant 7 : i32
    %c0_i32_30 = arith.constant 0 : i32
    %67 = tpu.memref_slice %arg2[%66, %c0_i32_30] : memref<32x128xf32, #tpu.memory_space<vmem>> -> memref<1x128xf32, #tpu.memory_space<vmem>>
    %68 = tpu.memref_squeeze %67 : memref<1x128xf32, #tpu.memory_space<vmem>> -> memref<128xf32, #tpu.memory_space<vmem>>
    %c0_i32_31 = arith.constant 0 : i32
    %69 = tpu.memref_slice %arg3[%c7_i32_28, %c0_i32_31] : memref<16x128xf32, #tpu.memory_space<vmem>> -> memref<1x128xf32, #tpu.memory_space<vmem>>
    %70 = tpu.memref_squeeze %69 : memref<1x128xf32, #tpu.memory_space<vmem>> -> memref<128xf32, #tpu.memory_space<vmem>>
    %71 = tpu.memref_slice %arg4[%c7_i32_29] : memref<16x!tpu.dma_semaphore, #tpu.memory_space<semaphore_mem>> -> memref<1x!tpu.dma_semaphore, #tpu.memory_space<semaphore_mem>>
    %72 = tpu.memref_squeeze %71 : memref<1x!tpu.dma_semaphore, #tpu.memory_space<semaphore_mem>> -> memref<!tpu.dma_semaphore, #tpu.memory_space<semaphore_mem>>
    tpu.enqueue_dma source(%68 : memref<128xf32, #tpu.memory_space<vmem>>) target(%70 : memref<128xf32, #tpu.memory_space<vmem>>) target_semaphore(%72 : memref<!tpu.dma_semaphore, #tpu.memory_space<semaphore_mem>>)
    %c8_i32 = arith.constant 8 : i32
    %73 = arith.addi %0, %c8_i32 : i32
    %74 = arith.index_cast %73 : i32 to index
    %75 = memref.load %arg1[%74] : memref<16xi32, #tpu.memory_space<smem>>
    %c8_i32_32 = arith.constant 8 : i32
    %c8_i32_33 = arith.constant 8 : i32
    %c0_i32_34 = arith.constant 0 : i32
    %76 = tpu.memref_slice %arg2[%75, %c0_i32_34] : memref<32x128xf32, #tpu.memory_space<vmem>> -> memref<1x128xf32, #tpu.memory_space<vmem>>
    %77 = tpu.memref_squeeze %76 : memref<1x128xf32, #tpu.memory_space<vmem>> -> memref<128xf32, #tpu.memory_space<vmem>>
    %c0_i32_35 = arith.constant 0 : i32
    %78 = tpu.memref_slice %arg3[%c8_i32_32, %c0_i32_35] : memref<16x128xf32, #tpu.memory_space<vmem>> -> memref<1x128xf32, #tpu.memory_space<vmem>>
    %79 = tpu.memref_squeeze %78 : memref<1x128xf32, #tpu.memory_space<vmem>> -> memref<128xf32, #tpu.memory_space<vmem>>
    %80 = tpu.memref_slice %arg4[%c8_i32_33] : memref<16x!tpu.dma_semaphore, #tpu.memory_space<semaphore_mem>> -> memref<1x!tpu.dma_semaphore, #tpu.memory_space<semaphore_mem>>
    %81 = tpu.memref_squeeze %80 : memref<1x!tpu.dma_semaphore, #tpu.memory_space<semaphore_mem>> -> memref<!tpu.dma_semaphore, #tpu.memory_space<semaphore_mem>>
    tpu.enqueue_dma source(%77 : memref<128xf32, #tpu.memory_space<vmem>>) target(%79 : memref<128xf32, #tpu.memory_space<vmem>>) target_semaphore(%81 : memref<!tpu.dma_semaphore, #tpu.memory_space<semaphore_mem>>)
    %c9_i32 = arith.constant 9 : i32
    %82 = arith.addi %0, %c9_i32 : i32
    %83 = arith.index_cast %82 : i32 to index
    %84 = memref.load %arg1[%83] : memref<16xi32, #tpu.memory_space<smem>>
    %c9_i32_36 = arith.constant 9 : i32
    %c9_i32_37 = arith.constant 9 : i32
    %c0_i32_38 = arith.constant 0 : i32
    %85 = tpu.memref_slice %arg2[%84, %c0_i32_38] : memref<32x128xf32, #tpu.memory_space<vmem>> -> memref<1x128xf32, #tpu.memory_space<vmem>>
    %86 = tpu.memref_squeeze %85 : memref<1x128xf32, #tpu.memory_space<vmem>> -> memref<128xf32, #tpu.memory_space<vmem>>
    %c0_i32_39 = arith.constant 0 : i32
    %87 = tpu.memref_slice %arg3[%c9_i32_36, %c0_i32_39] : memref<16x128xf32, #tpu.memory_space<vmem>> -> memref<1x128xf32, #tpu.memory_space<vmem>>
    %88 = tpu.memref_squeeze %87 : memref<1x128xf32, #tpu.memory_space<vmem>> -> memref<128xf32, #tpu.memory_space<vmem>>
    %89 = tpu.memref_slice %arg4[%c9_i32_37] : memref<16x!tpu.dma_semaphore, #tpu.memory_space<semaphore_mem>> -> memref<1x!tpu.dma_semaphore, #tpu.memory_space<semaphore_mem>>
    %90 = tpu.memref_squeeze %89 : memref<1x!tpu.dma_semaphore, #tpu.memory_space<semaphore_mem>> -> memref<!tpu.dma_semaphore, #tpu.memory_space<semaphore_mem>>
    tpu.enqueue_dma source(%86 : memref<128xf32, #tpu.memory_space<vmem>>) target(%88 : memref<128xf32, #tpu.memory_space<vmem>>) target_semaphore(%90 : memref<!tpu.dma_semaphore, #tpu.memory_space<semaphore_mem>>)
    %c10_i32 = arith.constant 10 : i32
    %91 = arith.addi %0, %c10_i32 : i32
    %92 = arith.index_cast %91 : i32 to index
    %93 = memref.load %arg1[%92] : memref<16xi32, #tpu.memory_space<smem>>
    %c10_i32_40 = arith.constant 10 : i32
    %c10_i32_41 = arith.constant 10 : i32
    %c0_i32_42 = arith.constant 0 : i32
    %94 = tpu.memref_slice %arg2[%93, %c0_i32_42] : memref<32x128xf32, #tpu.memory_space<vmem>> -> memref<1x128xf32, #tpu.memory_space<vmem>>
    %95 = tpu.memref_squeeze %94 : memref<1x128xf32, #tpu.memory_space<vmem>> -> memref<128xf32, #tpu.memory_space<vmem>>
    %c0_i32_43 = arith.constant 0 : i32
    %96 = tpu.memref_slice %arg3[%c10_i32_40, %c0_i32_43] : memref<16x128xf32, #tpu.memory_space<vmem>> -> memref<1x128xf32, #tpu.memory_space<vmem>>
    %97 = tpu.memref_squeeze %96 : memref<1x128xf32, #tpu.memory_space<vmem>> -> memref<128xf32, #tpu.memory_space<vmem>>
    %98 = tpu.memref_slice %arg4[%c10_i32_41] : memref<16x!tpu.dma_semaphore, #tpu.memory_space<semaphore_mem>> -> memref<1x!tpu.dma_semaphore, #tpu.memory_space<semaphore_mem>>
    %99 = tpu.memref_squeeze %98 : memref<1x!tpu.dma_semaphore, #tpu.memory_space<semaphore_mem>> -> memref<!tpu.dma_semaphore, #tpu.memory_space<semaphore_mem>>
    tpu.enqueue_dma source(%95 : memref<128xf32, #tpu.memory_space<vmem>>) target(%97 : memref<128xf32, #tpu.memory_space<vmem>>) target_semaphore(%99 : memref<!tpu.dma_semaphore, #tpu.memory_space<semaphore_mem>>)
    %c11_i32 = arith.constant 11 : i32
    %100 = arith.addi %0, %c11_i32 : i32
    %101 = arith.index_cast %100 : i32 to index
    %102 = memref.load %arg1[%101] : memref<16xi32, #tpu.memory_space<smem>>
    %c11_i32_44 = arith.constant 11 : i32
    %c11_i32_45 = arith.constant 11 : i32
    %c0_i32_46 = arith.constant 0 : i32
    %103 = tpu.memref_slice %arg2[%102, %c0_i32_46] : memref<32x128xf32, #tpu.memory_space<vmem>> -> memref<1x128xf32, #tpu.memory_space<vmem>>
    %104 = tpu.memref_squeeze %103 : memref<1x128xf32, #tpu.memory_space<vmem>> -> memref<128xf32, #tpu.memory_space<vmem>>
    %c0_i32_47 = arith.constant 0 : i32
    %105 = tpu.memref_slice %arg3[%c11_i32_44, %c0_i32_47] : memref<16x128xf32, #tpu.memory_space<vmem>> -> memref<1x128xf32, #tpu.memory_space<vmem>>
    %106 = tpu.memref_squeeze %105 : memref<1x128xf32, #tpu.memory_space<vmem>> -> memref<128xf32, #tpu.memory_space<vmem>>
    %107 = tpu.memref_slice %arg4[%c11_i32_45] : memref<16x!tpu.dma_semaphore, #tpu.memory_space<semaphore_mem>> -> memref<1x!tpu.dma_semaphore, #tpu.memory_space<semaphore_mem>>
    %108 = tpu.memref_squeeze %107 : memref<1x!tpu.dma_semaphore, #tpu.memory_space<semaphore_mem>> -> memref<!tpu.dma_semaphore, #tpu.memory_space<semaphore_mem>>
    tpu.enqueue_dma source(%104 : memref<128xf32, #tpu.memory_space<vmem>>) target(%106 : memref<128xf32, #tpu.memory_space<vmem>>) target_semaphore(%108 : memref<!tpu.dma_semaphore, #tpu.memory_space<semaphore_mem>>)
    %c12_i32 = arith.constant 12 : i32
    %109 = arith.addi %0, %c12_i32 : i32
    %110 = arith.index_cast %109 : i32 to index
    %111 = memref.load %arg1[%110] : memref<16xi32, #tpu.memory_space<smem>>
    %c12_i32_48 = arith.constant 12 : i32
    %c12_i32_49 = arith.constant 12 : i32
    %c0_i32_50 = arith.constant 0 : i32
    %112 = tpu.memref_slice %arg2[%111, %c0_i32_50] : memref<32x128xf32, #tpu.memory_space<vmem>> -> memref<1x128xf32, #tpu.memory_space<vmem>>
    %113 = tpu.memref_squeeze %112 : memref<1x128xf32, #tpu.memory_space<vmem>> -> memref<128xf32, #tpu.memory_space<vmem>>
    %c0_i32_51 = arith.constant 0 : i32
    %114 = tpu.memref_slice %arg3[%c12_i32_48, %c0_i32_51] : memref<16x128xf32, #tpu.memory_space<vmem>> -> memref<1x128xf32, #tpu.memory_space<vmem>>
    %115 = tpu.memref_squeeze %114 : memref<1x128xf32, #tpu.memory_space<vmem>> -> memref<128xf32, #tpu.memory_space<vmem>>
    %116 = tpu.memref_slice %arg4[%c12_i32_49] : memref<16x!tpu.dma_semaphore, #tpu.memory_space<semaphore_mem>> -> memref<1x!tpu.dma_semaphore, #tpu.memory_space<semaphore_mem>>
    %117 = tpu.memref_squeeze %116 : memref<1x!tpu.dma_semaphore, #tpu.memory_space<semaphore_mem>> -> memref<!tpu.dma_semaphore, #tpu.memory_space<semaphore_mem>>
    tpu.enqueue_dma source(%113 : memref<128xf32, #tpu.memory_space<vmem>>) target(%115 : memref<128xf32, #tpu.memory_space<vmem>>) target_semaphore(%117 : memref<!tpu.dma_semaphore, #tpu.memory_space<semaphore_mem>>)
    %c13_i32 = arith.constant 13 : i32
    %118 = arith.addi %0, %c13_i32 : i32
    %119 = arith.index_cast %118 : i32 to index
    %120 = memref.load %arg1[%119] : memref<16xi32, #tpu.memory_space<smem>>
    %c13_i32_52 = arith.constant 13 : i32
    %c13_i32_53 = arith.constant 13 : i32
    %c0_i32_54 = arith.constant 0 : i32
    %121 = tpu.memref_slice %arg2[%120, %c0_i32_54] : memref<32x128xf32, #tpu.memory_space<vmem>> -> memref<1x128xf32, #tpu.memory_space<vmem>>
    %122 = tpu.memref_squeeze %121 : memref<1x128xf32, #tpu.memory_space<vmem>> -> memref<128xf32, #tpu.memory_space<vmem>>
    %c0_i32_55 = arith.constant 0 : i32
    %123 = tpu.memref_slice %arg3[%c13_i32_52, %c0_i32_55] : memref<16x128xf32, #tpu.memory_space<vmem>> -> memref<1x128xf32, #tpu.memory_space<vmem>>
    %124 = tpu.memref_squeeze %123 : memref<1x128xf32, #tpu.memory_space<vmem>> -> memref<128xf32, #tpu.memory_space<vmem>>
    %125 = tpu.memref_slice %arg4[%c13_i32_53] : memref<16x!tpu.dma_semaphore, #tpu.memory_space<semaphore_mem>> -> memref<1x!tpu.dma_semaphore, #tpu.memory_space<semaphore_mem>>
    %126 = tpu.memref_squeeze %125 : memref<1x!tpu.dma_semaphore, #tpu.memory_space<semaphore_mem>> -> memref<!tpu.dma_semaphore, #tpu.memory_space<semaphore_mem>>
    tpu.enqueue_dma source(%122 : memref<128xf32, #tpu.memory_space<vmem>>) target(%124 : memref<128xf32, #tpu.memory_space<vmem>>) target_semaphore(%126 : memref<!tpu.dma_semaphore, #tpu.memory_space<semaphore_mem>>)
    %c14_i32 = arith.constant 14 : i32
    %127 = arith.addi %0, %c14_i32 : i32
    %128 = arith.index_cast %127 : i32 to index
    %129 = memref.load %arg1[%128] : memref<16xi32, #tpu.memory_space<smem>>
    %c14_i32_56 = arith.constant 14 : i32
    %c14_i32_57 = arith.constant 14 : i32
    %c0_i32_58 = arith.constant 0 : i32
    %130 = tpu.memref_slice %arg2[%129, %c0_i32_58] : memref<32x128xf32, #tpu.memory_space<vmem>> -> memref<1x128xf32, #tpu.memory_space<vmem>>
    %131 = tpu.memref_squeeze %130 : memref<1x128xf32, #tpu.memory_space<vmem>> -> memref<128xf32, #tpu.memory_space<vmem>>
    %c0_i32_59 = arith.constant 0 : i32
    %132 = tpu.memref_slice %arg3[%c14_i32_56, %c0_i32_59] : memref<16x128xf32, #tpu.memory_space<vmem>> -> memref<1x128xf32, #tpu.memory_space<vmem>>
    %133 = tpu.memref_squeeze %132 : memref<1x128xf32, #tpu.memory_space<vmem>> -> memref<128xf32, #tpu.memory_space<vmem>>
    %134 = tpu.memref_slice %arg4[%c14_i32_57] : memref<16x!tpu.dma_semaphore, #tpu.memory_space<semaphore_mem>> -> memref<1x!tpu.dma_semaphore, #tpu.memory_space<semaphore_mem>>
    %135 = tpu.memref_squeeze %134 : memref<1x!tpu.dma_semaphore, #tpu.memory_space<semaphore_mem>> -> memref<!tpu.dma_semaphore, #tpu.memory_space<semaphore_mem>>
    tpu.enqueue_dma source(%131 : memref<128xf32, #tpu.memory_space<vmem>>) target(%133 : memref<128xf32, #tpu.memory_space<vmem>>) target_semaphore(%135 : memref<!tpu.dma_semaphore, #tpu.memory_space<semaphore_mem>>)
    %c15_i32 = arith.constant 15 : i32
    %136 = arith.addi %0, %c15_i32 : i32
    %137 = arith.index_cast %136 : i32 to index
    %138 = memref.load %arg1[%137] : memref<16xi32, #tpu.memory_space<smem>>
    %c15_i32_60 = arith.constant 15 : i32
    %c15_i32_61 = arith.constant 15 : i32
    %c0_i32_62 = arith.constant 0 : i32
    %139 = tpu.memref_slice %arg2[%138, %c0_i32_62] : memref<32x128xf32, #tpu.memory_space<vmem>> -> memref<1x128xf32, #tpu.memory_space<vmem>>
    %140 = tpu.memref_squeeze %139 : memref<1x128xf32, #tpu.memory_space<vmem>> -> memref<128xf32, #tpu.memory_space<vmem>>
    %c0_i32_63 = arith.constant 0 : i32
    %141 = tpu.memref_slice %arg3[%c15_i32_60, %c0_i32_63] : memref<16x128xf32, #tpu.memory_space<vmem>> -> memref<1x128xf32, #tpu.memory_space<vmem>>
    %142 = tpu.memref_squeeze %141 : memref<1x128xf32, #tpu.memory_space<vmem>> -> memref<128xf32, #tpu.memory_space<vmem>>
    %143 = tpu.memref_slice %arg4[%c15_i32_61] : memref<16x!tpu.dma_semaphore, #tpu.memory_space<semaphore_mem>> -> memref<1x!tpu.dma_semaphore, #tpu.memory_space<semaphore_mem>>
    %144 = tpu.memref_squeeze %143 : memref<1x!tpu.dma_semaphore, #tpu.memory_space<semaphore_mem>> -> memref<!tpu.dma_semaphore, #tpu.memory_space<semaphore_mem>>
    tpu.enqueue_dma source(%140 : memref<128xf32, #tpu.memory_space<vmem>>) target(%142 : memref<128xf32, #tpu.memory_space<vmem>>) target_semaphore(%144 : memref<!tpu.dma_semaphore, #tpu.memory_space<semaphore_mem>>)
    %c0_i32_64 = arith.constant 0 : i32
    %c16_i32_65 = arith.constant 16 : i32
    %145 = arith.addi %c0_i32_64, %c16_i32_65 : i32
    %c1_i32_66 = arith.constant 1 : i32
    scf.for %arg5 = %c0_i32_64 to %145 step %c1_i32_66  : i32 {
      %c16_i32_68 = arith.constant 16 : i32
      %c0_i32_69 = arith.constant 0 : i32
      %146 = arith.cmpi eq, %c16_i32_68, %c0_i32_69 : i32
      %c1_i32_70 = arith.constant 1 : i32
      %147 = arith.select %146, %c1_i32_70, %c16_i32_68 : i32
      %148 = arith.remsi %arg5, %147 : i32
      %c0_i32_71 = arith.constant 0 : i32
      %149 = arith.cmpi ne, %148, %c0_i32_71 : i32
      %c0_i32_72 = arith.constant 0 : i32
      %150 = arith.cmpi slt, %148, %c0_i32_72 : i32
      %c0_i32_73 = arith.constant 0 : i32
      %151 = arith.cmpi slt, %147, %c0_i32_73 : i32
      %152 = arith.xori %150, %151 : i1
      %153 = arith.andi %152, %149 : i1
      %154 = arith.addi %148, %147 : i32
      %155 = arith.select %153, %154, %148 : i32
      %c0_i32_74 = arith.constant 0 : i32
      %c0_i32_75 = arith.constant 0 : i32
      %156 = tpu.memref_slice %arg2[%c0_i32_74, %c0_i32_75] : memref<32x128xf32, #tpu.memory_space<vmem>> -> memref<1x128xf32, #tpu.memory_space<vmem>>
      %157 = tpu.memref_squeeze %156 : memref<1x128xf32, #tpu.memory_space<vmem>> -> memref<128xf32, #tpu.memory_space<vmem>>
      %c0_i32_76 = arith.constant 0 : i32
      %158 = tpu.memref_slice %arg3[%arg5, %c0_i32_76] : memref<16x128xf32, #tpu.memory_space<vmem>> -> memref<1x128xf32, #tpu.memory_space<vmem>>
      %159 = tpu.memref_squeeze %158 : memref<1x128xf32, #tpu.memory_space<vmem>> -> memref<128xf32, #tpu.memory_space<vmem>>
      %160 = tpu.memref_slice %arg4[%155] : memref<16x!tpu.dma_semaphore, #tpu.memory_space<semaphore_mem>> -> memref<1x!tpu.dma_semaphore, #tpu.memory_space<semaphore_mem>>
      %161 = tpu.memref_squeeze %160 : memref<1x!tpu.dma_semaphore, #tpu.memory_space<semaphore_mem>> -> memref<!tpu.dma_semaphore, #tpu.memory_space<semaphore_mem>>
      tpu.wait_dma2 semaphore(%161 : memref<!tpu.dma_semaphore, #tpu.memory_space<semaphore_mem>>) src(%157 : memref<128xf32, #tpu.memory_space<vmem>>) dst(%159 : memref<128xf32, #tpu.memory_space<vmem>>)
      %c16_i32_77 = arith.constant 16 : i32
      %162 = arith.addi %arg5, %c16_i32_77 : i32
      %c16_i32_78 = arith.constant 16 : i32
      %163 = arith.cmpi slt, %162, %c16_i32_78 : i32
      %164 = arith.extui %163 : i1 to i32
      %c0_i32_79 = arith.constant 0 : i32
      %165 = arith.cmpi ne, %164, %c0_i32_79 : i32
      scf.if %165 {
        %c16_i32_80 = arith.constant 16 : i32
        %166 = arith.addi %arg5, %c16_i32_80 : i32
        %167 = arith.addi %0, %166 : i32
        %168 = arith.index_cast %167 : i32 to index
        %169 = memref.load %arg1[%168] : memref<16xi32, #tpu.memory_space<smem>>
        %c16_i32_81 = arith.constant 16 : i32
        %c0_i32_82 = arith.constant 0 : i32
        %170 = arith.cmpi eq, %c16_i32_81, %c0_i32_82 : i32
        %c1_i32_83 = arith.constant 1 : i32
        %171 = arith.select %170, %c1_i32_83, %c16_i32_81 : i32
        %172 = arith.remsi %166, %171 : i32
        %c0_i32_84 = arith.constant 0 : i32
        %173 = arith.cmpi ne, %172, %c0_i32_84 : i32
        %c0_i32_85 = arith.constant 0 : i32
        %174 = arith.cmpi slt, %172, %c0_i32_85 : i32
        %c0_i32_86 = arith.constant 0 : i32
        %175 = arith.cmpi slt, %171, %c0_i32_86 : i32
        %176 = arith.xori %174, %175 : i1
        %177 = arith.andi %176, %173 : i1
        %178 = arith.addi %172, %171 : i32
        %179 = arith.select %177, %178, %172 : i32
        %c0_i32_87 = arith.constant 0 : i32
        %180 = tpu.memref_slice %arg2[%169, %c0_i32_87] : memref<32x128xf32, #tpu.memory_space<vmem>> -> memref<1x128xf32, #tpu.memory_space<vmem>>
        %181 = tpu.memref_squeeze %180 : memref<1x128xf32, #tpu.memory_space<vmem>> -> memref<128xf32, #tpu.memory_space<vmem>>
        %c0_i32_88 = arith.constant 0 : i32
        %182 = tpu.memref_slice %arg3[%166, %c0_i32_88] : memref<16x128xf32, #tpu.memory_space<vmem>> -> memref<1x128xf32, #tpu.memory_space<vmem>>
        %183 = tpu.memref_squeeze %182 : memref<1x128xf32, #tpu.memory_space<vmem>> -> memref<128xf32, #tpu.memory_space<vmem>>
        %184 = tpu.memref_slice %arg4[%179] : memref<16x!tpu.dma_semaphore, #tpu.memory_space<semaphore_mem>> -> memref<1x!tpu.dma_semaphore, #tpu.memory_space<semaphore_mem>>
        %185 = tpu.memref_squeeze %184 : memref<1x!tpu.dma_semaphore, #tpu.memory_space<semaphore_mem>> -> memref<!tpu.dma_semaphore, #tpu.memory_space<semaphore_mem>>
        tpu.enqueue_dma source(%181 : memref<128xf32, #tpu.memory_space<vmem>>) target(%183 : memref<128xf32, #tpu.memory_space<vmem>>) target_semaphore(%185 : memref<!tpu.dma_semaphore, #tpu.memory_space<semaphore_mem>>)
      } else {
      }
    }
    %c16_i32_67 = arith.constant 16 : i32
    return
  }
  func.func @transform_0(%arg0: i32, %arg1: memref<16xi32, #tpu.memory_space<smem>>) -> (i32, i32) {
    %c0_i32 = arith.constant 0 : i32
    %c0_i32_0 = arith.constant 0 : i32
    %c0_i32_1 = arith.constant 0 : i32
    return %c0_i32, %c0_i32_0 : i32, i32
  }
  func.func @transform_1(%arg0: i32, %arg1: memref<16xi32, #tpu.memory_space<smem>>) -> (i32, i32) {
    %c0_i32 = arith.constant 0 : i32
    %c0_i32_0 = arith.constant 0 : i32
    return %arg0, %c0_i32 : i32, i32
  }
}

</mosaic_0001>

<llo_original>
// kernel: tpu_custom_call.1
$region0: #{tpu_custom_call.1}
  #allocation0 [shape = 'u32[]', space=smem, size = 0x4, offset = 0x4, fixed_abs, tag = 'smem constant byte address 0x4 - core index']
  #allocation1 [shape = 'u32[72,128]{1,0:T(1,128)}', space=vmem, size = 0x9000, scoped, tag = 'internal scratch']
  #allocation2 [shape = 's32[16]{0}', space=sflag, size = 0x40, scoped, tag = 'scratch operand']
  #allocation3 [shape = 's32[1]{0}', space=sflag, size = 0x4, scoped, tag = 'scoped memory for tpu_custom_call.1']
  #allocation4 [shape = 'u8[512]{0}', space=smem, size = 0x200, scoped, tag = 'prefetched SMEM operand 0']
  #allocation9 [shape = 's32[]', space=sflag, size = 0x4, offset = 0, fixed_abs, tag = 'sflag constant byte address 0x0 - dummy sync flag']
  #allocation10 [shape = 's32[]', space=sflag, size = 0x4, offset = 0, fixed_abs, tag = 'sflag constant byte address 0x0 - dummy sync flag']
  #allocation11 [shape = 's32[]', space=sflag, size = 0x4, offset = 0, fixed_abs, tag = 'sflag constant byte address 0x0 - dummy sync flag']
  #allocation12 [shape = 's32[]', space=sflag, size = 0x4, offset = 0, fixed_abs, tag = 'sflag constant byte address 0x0 - dummy sync flag']
  #allocation13 [shape = 's32[]', space=sflag, size = 0x4, offset = 0, fixed_abs, tag = 'sflag constant byte address 0x0 - dummy sync flag']
  #allocation14 [shape = 's32[]', space=sflag, size = 0x4, offset = 0, fixed_abs, tag = 'sflag constant byte address 0x0 - dummy sync flag']
  #allocation15 [shape = 's32[]', space=sflag, size = 0x4, offset = 0, fixed_abs, tag = 'sflag constant byte address 0x0 - dummy sync flag']
  #allocation16 [shape = 's32[]', space=sflag, size = 0x4, offset = 0, fixed_abs, tag = 'sflag constant byte address 0x0 - dummy sync flag']
  #allocation17 [shape = 's32[]', space=sflag, size = 0x4, offset = 0, fixed_abs, tag = 'sflag constant byte address 0x0 - dummy sync flag']
  #allocation18 [shape = 's32[]', space=sflag, size = 0x4, offset = 0, fixed_abs, tag = 'sflag constant byte address 0x0 - dummy sync flag']
  #allocation19 [shape = 's32[]', space=sflag, size = 0x4, offset = 0, fixed_abs, tag = 'sflag constant byte address 0x0 - dummy sync flag']
  #allocation20 [shape = 's32[]', space=sflag, size = 0x4, offset = 0, fixed_abs, tag = 'sflag constant byte address 0x0 - dummy sync flag']
  #allocation21 [shape = 's32[]', space=sflag, size = 0x4, offset = 0, fixed_abs, tag = 'sflag constant byte address 0x0 - dummy sync flag']
  #allocation22 [shape = 's32[]', space=sflag, size = 0x4, offset = 0, fixed_abs, tag = 'sflag constant byte address 0x0 - dummy sync flag']
  #allocation23 [shape = 's32[]', space=sflag, size = 0x4, offset = 0, fixed_abs, tag = 'sflag constant byte address 0x0 - dummy sync flag']
  #allocation24 [shape = 's32[]', space=sflag, size = 0x4, offset = 0, fixed_abs, tag = 'sflag constant byte address 0x0 - dummy sync flag']
  #allocation25 [shape = 's32[]', space=sflag, size = 0x4, offset = 0, fixed_abs, tag = 'sflag constant byte address 0x0 - dummy sync flag']
  %s0 = inlined_call_operand.hbm [shape: s32[16], index: 0, kind: input, shape index: {}]
  %s1 = inlined_call_operand.hbm [shape: f32[32,128], index: 1, kind: input, shape index: {}]
  %s2 = inlined_call_operand.hbm [shape: f32[16,128], index: 2, kind: output, shape index: {}]
  %s3 = sld [smem:[#allocation0]]
  $region539: #{tpu_custom_call.1} parent=0
    _
  %s5 = ssub.s32 1, %s3
  %s6 = scalar_select 0, %s5, %s3
  %s8 = sshll.u32 %s0, 4
  %s9 = int_to_ptr.hbm [resolvable:$true] %s8
  %11 = dma.hbm_to_smem %s9, 16, [#allocation4], [#allocation3]
  %13 = dma.done [#allocation3], 16
  %14 = sfence
  $region1: #{tpu_custom_call.1} parent=0
    #allocation5 [shape = 'u8[16384]{0}', space=vmem, size = 0x4000, scoped, tag = 'input window, operand 1, single buffered']
    #allocation6 [shape = 's32[1]{0}', space=sflag, size = 0x4, scoped, tag = 'scoped memory for tpu_custom_call.1']
    #allocation7 [shape = 's32[1]{0}', space=sflag, size = 0x4, scoped, tag = 'scoped memory for tpu_custom_call.1']
    #allocation8 [shape = 'u8[8192]{0}', space=vmem, size = 0x2000, scoped, tag = 'output window, operand 0, single buffered']
    %15 = vsyncpa [#allocation6], 0
    %16 = vsyncpa [#allocation7], 0
    // Predicated region
    $region2: #{tpu_custom_call.1} parent=1 // pred_check
      _
    $region3: #{tpu_custom_call.1} parent=1 // pred_check_branch
      %18 = sbr.rel (0) target = $region5
    $region4: #{tpu_custom_call.1} parent=1 // pred_region
      %20 = vsyncadd [#allocation6], 0
      %s21 = sshll.u32 %s1, 4
      %s22 = int_to_ptr.hbm [resolvable:$true] %s21
      %s23 = sshll.u32 [#allocation5], 4
      %s24 = int_to_ptr.vmem [resolvable:$true] %s23
      %29 = dma.hbm_to_vmem [thread:$0]  %s22, 512, %s24, [#allocation6], 128, 128, 8
    $region5: #{tpu_custom_call.1} parent=1 // pred_fallthru
      _
    // Predicated region
    $region6: #{tpu_custom_call.1} parent=1 // pred_check
      _
    $region7: #{tpu_custom_call.1} parent=1 // pred_check_branch
      %31 = sbr.rel (0) target = $region9
    $region8: #{tpu_custom_call.1} parent=1 // pred_region
      %33 = dma.done [#allocation6], 512
    $region9: #{tpu_custom_call.1} parent=1 // pred_fallthru
      _
    %s34 = smul.u32 0, 16
    %s35 = sld [smem:[#allocation4 + %s34]]
    %s36 = scalar_lea.vmem [#allocation5], %s35
    // Predicated region
    $region10: #{tpu_custom_call.1} parent=1 // pred_check
      _
    $region11: #{tpu_custom_call.1} parent=1 // pred_check_branch
      %38 = sbr.rel target = $region13
    $region12: #{tpu_custom_call.1} parent=1 // pred_region
      // Predicated region
      $region25: #{tpu_custom_call.1} parent=12 // pred_check
        _
      $region26: #{tpu_custom_call.1} parent=12 // pred_check_branch
        %54 = sbr.rel (0) target = $region28
      $region27: #{tpu_custom_call.1} parent=12 // pred_region
        %s56 = ssub.s32 2, 1
        loop: start=0, step=1, limit=1
        $region29: #{tpu_custom_call.1} parent=27 // loop_pre_header
          _
        $region30: #{tpu_custom_call.1} parent=27 // loop_header
          %s58 = sphi 0, %s62
          %p59 = scmp.ge.s32.totalorder %s58, 1
          %s63 = sphi %s36, %s36
          %s64 = sphi [#allocation8], [#allocation8]
        $region31: #{tpu_custom_call.1} parent=27 // loop_header_branch
          %61 = sbr.rel (%p59) target = $region35
        $region32: #{tpu_custom_call.1} parent=27 // loop_body
          %v65 = vld [vmem:[%s63] sm:%s56]
          %66 = vst [vmem:[%s64] sm:%s56] %v65
        $region33: #{tpu_custom_call.1} parent=27 // loop_footer
          %s62 = sadd.s32 1, %s58
        $region34: #{tpu_custom_call.1} parent=27 // loop_footer_branch
          %57 = sbr.rel target = $region30
        $region35: #{tpu_custom_call.1} parent=27 // loop_exit
          _
      $region28: #{tpu_custom_call.1} parent=12 // pred_fallthru
        _
    $region13: #{tpu_custom_call.1} parent=1 // pred_fallthru
      _
    // Predicated region
    $region14: #{tpu_custom_call.1} parent=1 // pred_check
      _
    $region15: #{tpu_custom_call.1} parent=1 // pred_check_branch
      %40 = sbr.rel (0) target = $region17
    $region16: #{tpu_custom_call.1} parent=1 // pred_region
      %s42 = ssub.s32 2, 1
      loop: start=0, step=1, limit=1
      $region18: #{tpu_custom_call.1} parent=16 // loop_pre_header
        _
      $region19: #{tpu_custom_call.1} parent=16 // loop_header
        %s44 = sphi 0, %s48
        %p45 = scmp.ge.s32.totalorder %s44, 1
        %s49 = sphi %s36, %s36
        %s50 = sphi [#allocation8], [#allocation8]
      $region20: #{tpu_custom_call.1} parent=16 // loop_header_branch
        %47 = sbr.rel (%p45) target = $region24
      $region21: #{tpu_custom_call.1} parent=16 // loop_body
        %v51 = vld [vmem:[%s49] sm:%s42]
        %52 = vst [vmem:[%s50] sm:%s42] %v51
      $region22: #{tpu_custom_call.1} parent=16 // loop_footer
        %s48 = sadd.s32 1, %s44
      $region23: #{tpu_custom_call.1} parent=16 // loop_footer_branch
        %43 = sbr.rel target = $region19
      $region24: #{tpu_custom_call.1} parent=16 // loop_exit
        _
    $region17: #{tpu_custom_call.1} parent=1 // pred_fallthru
      _
    // Predicated region
    $region36: #{tpu_custom_call.1} parent=1 // pred_check
      _
    $region37: #{tpu_custom_call.1} parent=1 // pred_check_branch
      %69 = sbr.rel (0) target = $region39
    $region38: #{tpu_custom_call.1} parent=1 // pred_region
      %70 = vsyncadd [#allocation2], 16
    $region39: #{tpu_custom_call.1} parent=1 // pred_fallthru
      _
    %s71 = sadd.s32 %s34, 1
    %s72 = sld [smem:[#allocation4 + %s71]]
    %s73 = scalar_lea.vmem [#allocation5], %s72
    %s74 = scalar_lea.vmem [#allocation8], 1
    %s75 = scalar_lea.sflag [#allocation2], 1
    // Predicated region
    $region40: #{tpu_custom_call.1} parent=1 // pred_check
      _
    $region41: #{tpu_custom_call.1} parent=1 // pred_check_branch
      %77 = sbr.rel target = $region43
    $region42: #{tpu_custom_call.1} parent=1 // pred_region
      // Predicated region
      $region55: #{tpu_custom_call.1} parent=42 // pred_check
        _
      $region56: #{tpu_custom_call.1} parent=42 // pred_check_branch
        %93 = sbr.rel (0) target = $region58
      $region57: #{tpu_custom_call.1} parent=42 // pred_region
        %s95 = ssub.s32 2, 1
        loop: start=0, step=1, limit=1
        $region59: #{tpu_custom_call.1} parent=57 // loop_pre_header
          _
        $region60: #{tpu_custom_call.1} parent=57 // loop_header
          %s97 = sphi 0, %s101
          %p98 = scmp.ge.s32.totalorder %s97, 1
          %s102 = sphi %s73, %s73
          %s103 = sphi %s74, %s74
        $region61: #{tpu_custom_call.1} parent=57 // loop_header_branch
          %100 = sbr.rel (%p98) target = $region65
        $region62: #{tpu_custom_call.1} parent=57 // loop_body
          %v104 = vld [vmem:[%s102] sm:%s95]
          %105 = vst [vmem:[%s103] sm:%s95] %v104
        $region63: #{tpu_custom_call.1} parent=57 // loop_footer
          %s101 = sadd.s32 1, %s97
        $region64: #{tpu_custom_call.1} parent=57 // loop_footer_branch
          %96 = sbr.rel target = $region60
        $region65: #{tpu_custom_call.1} parent=57 // loop_exit
          _
      $region58: #{tpu_custom_call.1} parent=42 // pred_fallthru
        _
    $region43: #{tpu_custom_call.1} parent=1 // pred_fallthru
      _
    // Predicated region
    $region44: #{tpu_custom_call.1} parent=1 // pred_check
      _
    $region45: #{tpu_custom_call.1} parent=1 // pred_check_branch
      %79 = sbr.rel (0) target = $region47
    $region46: #{tpu_custom_call.1} parent=1 // pred_region
      %s81 = ssub.s32 2, 1
      loop: start=0, step=1, limit=1
      $region48: #{tpu_custom_call.1} parent=46 // loop_pre_header
        _
      $region49: #{tpu_custom_call.1} parent=46 // loop_header
        %s83 = sphi 0, %s87
        %p84 = scmp.ge.s32.totalorder %s83, 1
        %s88 = sphi %s73, %s73
        %s89 = sphi %s74, %s74
      $region50: #{tpu_custom_call.1} parent=46 // loop_header_branch
        %86 = sbr.rel (%p84) target = $region54
      $region51: #{tpu_custom_call.1} parent=46 // loop_body
        %v90 = vld [vmem:[%s88] sm:%s81]
        %91 = vst [vmem:[%s89] sm:%s81] %v90
      $region52: #{tpu_custom_call.1} parent=46 // loop_footer
        %s87 = sadd.s32 1, %s83
      $region53: #{tpu_custom_call.1} parent=46 // loop_footer_branch
        %82 = sbr.rel target = $region49
      $region54: #{tpu_custom_call.1} parent=46 // loop_exit
        _
    $region47: #{tpu_custom_call.1} parent=1 // pred_fallthru
      _
    // Predicated region
    $region66: #{tpu_custom_call.1} parent=1 // pred_check
      _
    $region67: #{tpu_custom_call.1} parent=1 // pred_check_branch
      %108 = sbr.rel (0) target = $region69
    $region68: #{tpu_custom_call.1} parent=1 // pred_region
      %109 = vsyncadd %s75, 16
    $region69: #{tpu_custom_call.1} parent=1 // pred_fallthru
      _
    %s110 = sadd.s32 %s34, 2
    %s111 = sld [smem:[#allocation4 + %s110]]
    %s112 = scalar_lea.vmem [#allocation5], %s111
    %s113 = scalar_lea.vmem [#allocation8], 2
    %s114 = scalar_lea.sflag [#allocation2], 2
    // Predicated region
    $region70: #{tpu_custom_call.1} parent=1 // pred_check
      _
    $region71: #{tpu_custom_call.1} parent=1 // pred_check_branch
      %116 = sbr.rel target = $region73
    $region72: #{tpu_custom_call.1} parent=1 // pred_region
      // Predicated region
      $region85: #{tpu_custom_call.1} parent=72 // pred_check
        _
      $region86: #{tpu_custom_call.1} parent=72 // pred_check_branch
        %132 = sbr.rel (0) target = $region88
      $region87: #{tpu_custom_call.1} parent=72 // pred_region
        %s134 = ssub.s32 2, 1
        loop: start=0, step=1, limit=1
        $region89: #{tpu_custom_call.1} parent=87 // loop_pre_header
          _
        $region90: #{tpu_custom_call.1} parent=87 // loop_header
          %s136 = sphi 0, %s140
          %p137 = scmp.ge.s32.totalorder %s136, 1
          %s141 = sphi %s112, %s112
          %s142 = sphi %s113, %s113
        $region91: #{tpu_custom_call.1} parent=87 // loop_header_branch
          %139 = sbr.rel (%p137) target = $region95
        $region92: #{tpu_custom_call.1} parent=87 // loop_body
          %v143 = vld [vmem:[%s141] sm:%s134]
          %144 = vst [vmem:[%s142] sm:%s134] %v143
        $region93: #{tpu_custom_call.1} parent=87 // loop_footer
          %s140 = sadd.s32 1, %s136
        $region94: #{tpu_custom_call.1} parent=87 // loop_footer_branch
          %135 = sbr.rel target = $region90
        $region95: #{tpu_custom_call.1} parent=87 // loop_exit
          _
      $region88: #{tpu_custom_call.1} parent=72 // pred_fallthru
        _
    $region73: #{tpu_custom_call.1} parent=1 // pred_fallthru
      _
    // Predicated region
    $region74: #{tpu_custom_call.1} parent=1 // pred_check
      _
    $region75: #{tpu_custom_call.1} parent=1 // pred_check_branch
      %118 = sbr.rel (0) target = $region77
    $region76: #{tpu_custom_call.1} parent=1 // pred_region
      %s120 = ssub.s32 2, 1
      loop: start=0, step=1, limit=1
      $region78: #{tpu_custom_call.1} parent=76 // loop_pre_header
        _
      $region79: #{tpu_custom_call.1} parent=76 // loop_header
        %s122 = sphi 0, %s126
        %p123 = scmp.ge.s32.totalorder %s122, 1
        %s127 = sphi %s112, %s112
        %s128 = sphi %s113, %s113
      $region80: #{tpu_custom_call.1} parent=76 // loop_header_branch
        %125 = sbr.rel (%p123) target = $region84
      $region81: #{tpu_custom_call.1} parent=76 // loop_body
        %v129 = vld [vmem:[%s127] sm:%s120]
        %130 = vst [vmem:[%s128] sm:%s120] %v129
      $region82: #{tpu_custom_call.1} parent=76 // loop_footer
        %s126 = sadd.s32 1, %s122
      $region83: #{tpu_custom_call.1} parent=76 // loop_footer_branch
        %121 = sbr.rel target = $region79
      $region84: #{tpu_custom_call.1} parent=76 // loop_exit
        _
    $region77: #{tpu_custom_call.1} parent=1 // pred_fallthru
      _
    // Predicated region
    $region96: #{tpu_custom_call.1} parent=1 // pred_check
      _
    $region97: #{tpu_custom_call.1} parent=1 // pred_check_branch
      %147 = sbr.rel (0) target = $region99
    $region98: #{tpu_custom_call.1} parent=1 // pred_region
      %148 = vsyncadd %s114, 16
    $region99: #{tpu_custom_call.1} parent=1 // pred_fallthru
      _
    %s149 = sadd.s32 %s34, 3
    %s150 = sld [smem:[#allocation4 + %s149]]
    %s151 = scalar_lea.vmem [#allocation5], %s150
    %s152 = scalar_lea.vmem [#allocation8], 3
    %s153 = scalar_lea.sflag [#allocation2], 3
    // Predicated region
    $region100: #{tpu_custom_call.1} parent=1 // pred_check
      _
    $region101: #{tpu_custom_call.1} parent=1 // pred_check_branch
      %155 = sbr.rel target = $region103
    $region102: #{tpu_custom_call.1} parent=1 // pred_region
      // Predicated region
      $region115: #{tpu_custom_call.1} parent=102 // pred_check
        _
      $region116: #{tpu_custom_call.1} parent=102 // pred_check_branch
        %171 = sbr.rel (0) target = $region118
      $region117: #{tpu_custom_call.1} parent=102 // pred_region
        %s173 = ssub.s32 2, 1
        loop: start=0, step=1, limit=1
        $region119: #{tpu_custom_call.1} parent=117 // loop_pre_header
          _
        $region120: #{tpu_custom_call.1} parent=117 // loop_header
          %s175 = sphi 0, %s179
          %p176 = scmp.ge.s32.totalorder %s175, 1
          %s180 = sphi %s151, %s151
          %s181 = sphi %s152, %s152
        $region121: #{tpu_custom_call.1} parent=117 // loop_header_branch
          %178 = sbr.rel (%p176) target = $region125
        $region122: #{tpu_custom_call.1} parent=117 // loop_body
          %v182 = vld [vmem:[%s180] sm:%s173]
          %183 = vst [vmem:[%s181] sm:%s173] %v182
        $region123: #{tpu_custom_call.1} parent=117 // loop_footer
          %s179 = sadd.s32 1, %s175
        $region124: #{tpu_custom_call.1} parent=117 // loop_footer_branch
          %174 = sbr.rel target = $region120
        $region125: #{tpu_custom_call.1} parent=117 // loop_exit
          _
      $region118: #{tpu_custom_call.1} parent=102 // pred_fallthru
        _
    $region103: #{tpu_custom_call.1} parent=1 // pred_fallthru
      _
    // Predicated region
    $region104: #{tpu_custom_call.1} parent=1 // pred_check
      _
    $region105: #{tpu_custom_call.1} parent=1 // pred_check_branch
      %157 = sbr.rel (0) target = $region107
    $region106: #{tpu_custom_call.1} parent=1 // pred_region
      %s159 = ssub.s32 2, 1
      loop: start=0, step=1, limit=1
      $region108: #{tpu_custom_call.1} parent=106 // loop_pre_header
        _
      $region109: #{tpu_custom_call.1} parent=106 // loop_header
        %s161 = sphi 0, %s165
        %p162 = scmp.ge.s32.totalorder %s161, 1
        %s166 = sphi %s151, %s151
        %s167 = sphi %s152, %s152
      $region110: #{tpu_custom_call.1} parent=106 // loop_header_branch
        %164 = sbr.rel (%p162) target = $region114
      $region111: #{tpu_custom_call.1} parent=106 // loop_body
        %v168 = vld [vmem:[%s166] sm:%s159]
        %169 = vst [vmem:[%s167] sm:%s159] %v168
      $region112: #{tpu_custom_call.1} parent=106 // loop_footer
        %s165 = sadd.s32 1, %s161
      $region113: #{tpu_custom_call.1} parent=106 // loop_footer_branch
        %160 = sbr.rel target = $region109
      $region114: #{tpu_custom_call.1} parent=106 // loop_exit
        _
    $region107: #{tpu_custom_call.1} parent=1 // pred_fallthru
      _
    // Predicated region
    $region126: #{tpu_custom_call.1} parent=1 // pred_check
      _
    $region127: #{tpu_custom_call.1} parent=1 // pred_check_branch
      %186 = sbr.rel (0) target = $region129
    $region128: #{tpu_custom_call.1} parent=1 // pred_region
      %187 = vsyncadd %s153, 16
    $region129: #{tpu_custom_call.1} parent=1 // pred_fallthru
      _
    %s188 = sadd.s32 %s34, 4
    %s189 = sld [smem:[#allocation4 + %s188]]
    %s190 = scalar_lea.vmem [#allocation5], %s189
    %s191 = scalar_lea.vmem [#allocation8], 4
    %s192 = scalar_lea.sflag [#allocation2], 4
    // Predicated region
    $region130: #{tpu_custom_call.1} parent=1 // pred_check
      _
    $region131: #{tpu_custom_call.1} parent=1 // pred_check_branch
      %194 = sbr.rel target = $region133
    $region132: #{tpu_custom_call.1} parent=1 // pred_region
      // Predicated region
      $region145: #{tpu_custom_call.1} parent=132 // pred_check
        _
      $region146: #{tpu_custom_call.1} parent=132 // pred_check_branch
        %210 = sbr.rel (0) target = $region148
      $region147: #{tpu_custom_call.1} parent=132 // pred_region
        %s212 = ssub.s32 2, 1
        loop: start=0, step=1, limit=1
        $region149: #{tpu_custom_call.1} parent=147 // loop_pre_header
          _
        $region150: #{tpu_custom_call.1} parent=147 // loop_header
          %s214 = sphi 0, %s218
          %p215 = scmp.ge.s32.totalorder %s214, 1
          %s219 = sphi %s190, %s190
          %s220 = sphi %s191, %s191
        $region151: #{tpu_custom_call.1} parent=147 // loop_header_branch
          %217 = sbr.rel (%p215) target = $region155
        $region152: #{tpu_custom_call.1} parent=147 // loop_body
          %v221 = vld [vmem:[%s219] sm:%s212]
          %222 = vst [vmem:[%s220] sm:%s212] %v221
        $region153: #{tpu_custom_call.1} parent=147 // loop_footer
          %s218 = sadd.s32 1, %s214
        $region154: #{tpu_custom_call.1} parent=147 // loop_footer_branch
          %213 = sbr.rel target = $region150
        $region155: #{tpu_custom_call.1} parent=147 // loop_exit
          _
      $region148: #{tpu_custom_call.1} parent=132 // pred_fallthru
        _
    $region133: #{tpu_custom_call.1} parent=1 // pred_fallthru
      _
    // Predicated region
    $region134: #{tpu_custom_call.1} parent=1 // pred_check
      _
    $region135: #{tpu_custom_call.1} parent=1 // pred_check_branch
      %196 = sbr.rel (0) target = $region137
    $region136: #{tpu_custom_call.1} parent=1 // pred_region
      %s198 = ssub.s32 2, 1
      loop: start=0, step=1, limit=1
      $region138: #{tpu_custom_call.1} parent=136 // loop_pre_header
        _
      $region139: #{tpu_custom_call.1} parent=136 // loop_header
        %s200 = sphi 0, %s204
        %p201 = scmp.ge.s32.totalorder %s200, 1
        %s205 = sphi %s190, %s190
        %s206 = sphi %s191, %s191
      $region140: #{tpu_custom_call.1} parent=136 // loop_header_branch
        %203 = sbr.rel (%p201) target = $region144
      $region141: #{tpu_custom_call.1} parent=136 // loop_body
        %v207 = vld [vmem:[%s205] sm:%s198]
        %208 = vst [vmem:[%s206] sm:%s198] %v207
      $region142: #{tpu_custom_call.1} parent=136 // loop_footer
        %s204 = sadd.s32 1, %s200
      $region143: #{tpu_custom_call.1} parent=136 // loop_footer_branch
        %199 = sbr.rel target = $region139
      $region144: #{tpu_custom_call.1} parent=136 // loop_exit
        _
    $region137: #{tpu_custom_call.1} parent=1 // pred_fallthru
      _
    // Predicated region
    $region156: #{tpu_custom_call.1} parent=1 // pred_check
      _
    $region157: #{tpu_custom_call.1} parent=1 // pred_check_branch
      %225 = sbr.rel (0) target = $region159
    $region158: #{tpu_custom_call.1} parent=1 // pred_region
      %226 = vsyncadd %s192, 16
    $region159: #{tpu_custom_call.1} parent=1 // pred_fallthru
      _
    %s227 = sadd.s32 %s34, 5
    %s228 = sld [smem:[#allocation4 + %s227]]
    %s229 = scalar_lea.vmem [#allocation5], %s228
    %s230 = scalar_lea.vmem [#allocation8], 5
    %s231 = scalar_lea.sflag [#allocation2], 5
    // Predicated region
    $region160: #{tpu_custom_call.1} parent=1 // pred_check
      _
    $region161: #{tpu_custom_call.1} parent=1 // pred_check_branch
      %233 = sbr.rel target = $region163
    $region162: #{tpu_custom_call.1} parent=1 // pred_region
      // Predicated region
      $region175: #{tpu_custom_call.1} parent=162 // pred_check
        _
      $region176: #{tpu_custom_call.1} parent=162 // pred_check_branch
        %249 = sbr.rel (0) target = $region178
      $region177: #{tpu_custom_call.1} parent=162 // pred_region
        %s251 = ssub.s32 2, 1
        loop: start=0, step=1, limit=1
        $region179: #{tpu_custom_call.1} parent=177 // loop_pre_header
          _
        $region180: #{tpu_custom_call.1} parent=177 // loop_header
          %s253 = sphi 0, %s257
          %p254 = scmp.ge.s32.totalorder %s253, 1
          %s258 = sphi %s229, %s229
          %s259 = sphi %s230, %s230
        $region181: #{tpu_custom_call.1} parent=177 // loop_header_branch
          %256 = sbr.rel (%p254) target = $region185
        $region182: #{tpu_custom_call.1} parent=177 // loop_body
          %v260 = vld [vmem:[%s258] sm:%s251]
          %261 = vst [vmem:[%s259] sm:%s251] %v260
        $region183: #{tpu_custom_call.1} parent=177 // loop_footer
          %s257 = sadd.s32 1, %s253
        $region184: #{tpu_custom_call.1} parent=177 // loop_footer_branch
          %252 = sbr.rel target = $region180
        $region185: #{tpu_custom_call.1} parent=177 // loop_exit
          _
      $region178: #{tpu_custom_call.1} parent=162 // pred_fallthru
        _
    $region163: #{tpu_custom_call.1} parent=1 // pred_fallthru
      _
    // Predicated region
    $region164: #{tpu_custom_call.1} parent=1 // pred_check
      _
    $region165: #{tpu_custom_call.1} parent=1 // pred_check_branch
      %235 = sbr.rel (0) target = $region167
    $region166: #{tpu_custom_call.1} parent=1 // pred_region
      %s237 = ssub.s32 2, 1
      loop: start=0, step=1, limit=1
      $region168: #{tpu_custom_call.1} parent=166 // loop_pre_header
        _
      $region169: #{tpu_custom_call.1} parent=166 // loop_header
        %s239 = sphi 0, %s243
        %p240 = scmp.ge.s32.totalorder %s239, 1
        %s244 = sphi %s229, %s229
        %s245 = sphi %s230, %s230
      $region170: #{tpu_custom_call.1} parent=166 // loop_header_branch
        %242 = sbr.rel (%p240) target = $region174
      $region171: #{tpu_custom_call.1} parent=166 // loop_body
        %v246 = vld [vmem:[%s244] sm:%s237]
        %247 = vst [vmem:[%s245] sm:%s237] %v246
      $region172: #{tpu_custom_call.1} parent=166 // loop_footer
        %s243 = sadd.s32 1, %s239
      $region173: #{tpu_custom_call.1} parent=166 // loop_footer_branch
        %238 = sbr.rel target = $region169
      $region174: #{tpu_custom_call.1} parent=166 // loop_exit
        _
    $region167: #{tpu_custom_call.1} parent=1 // pred_fallthru
      _
    // Predicated region
    $region186: #{tpu_custom_call.1} parent=1 // pred_check
      _
    $region187: #{tpu_custom_call.1} parent=1 // pred_check_branch
      %264 = sbr.rel (0) target = $region189
    $region188: #{tpu_custom_call.1} parent=1 // pred_region
      %265 = vsyncadd %s231, 16
    $region189: #{tpu_custom_call.1} parent=1 // pred_fallthru
      _
    %s266 = sadd.s32 %s34, 6
    %s267 = sld [smem:[#allocation4 + %s266]]
    %s268 = scalar_lea.vmem [#allocation5], %s267
    %s269 = scalar_lea.vmem [#allocation8], 6
    %s270 = scalar_lea.sflag [#allocation2], 6
    // Predicated region
    $region190: #{tpu_custom_call.1} parent=1 // pred_check
      _
    $region191: #{tpu_custom_call.1} parent=1 // pred_check_branch
      %272 = sbr.rel target = $region193
    $region192: #{tpu_custom_call.1} parent=1 // pred_region
      // Predicated region
      $region205: #{tpu_custom_call.1} parent=192 // pred_check
        _
      $region206: #{tpu_custom_call.1} parent=192 // pred_check_branch
        %288 = sbr.rel (0) target = $region208
      $region207: #{tpu_custom_call.1} parent=192 // pred_region
        %s290 = ssub.s32 2, 1
        loop: start=0, step=1, limit=1
        $region209: #{tpu_custom_call.1} parent=207 // loop_pre_header
          _
        $region210: #{tpu_custom_call.1} parent=207 // loop_header
          %s292 = sphi 0, %s296
          %p293 = scmp.ge.s32.totalorder %s292, 1
          %s297 = sphi %s268, %s268
          %s298 = sphi %s269, %s269
        $region211: #{tpu_custom_call.1} parent=207 // loop_header_branch
          %295 = sbr.rel (%p293) target = $region215
        $region212: #{tpu_custom_call.1} parent=207 // loop_body
          %v299 = vld [vmem:[%s297] sm:%s290]
          %300 = vst [vmem:[%s298] sm:%s290] %v299
        $region213: #{tpu_custom_call.1} parent=207 // loop_footer
          %s296 = sadd.s32 1, %s292
        $region214: #{tpu_custom_call.1} parent=207 // loop_footer_branch
          %291 = sbr.rel target = $region210
        $region215: #{tpu_custom_call.1} parent=207 // loop_exit
          _
      $region208: #{tpu_custom_call.1} parent=192 // pred_fallthru
        _
    $region193: #{tpu_custom_call.1} parent=1 // pred_fallthru
      _
    // Predicated region
    $region194: #{tpu_custom_call.1} parent=1 // pred_check
      _
    $region195: #{tpu_custom_call.1} parent=1 // pred_check_branch
      %274 = sbr.rel (0) target = $region197
    $region196: #{tpu_custom_call.1} parent=1 // pred_region
      %s276 = ssub.s32 2, 1
      loop: start=0, step=1, limit=1
      $region198: #{tpu_custom_call.1} parent=196 // loop_pre_header
        _
      $region199: #{tpu_custom_call.1} parent=196 // loop_header
        %s278 = sphi 0, %s282
        %p279 = scmp.ge.s32.totalorder %s278, 1
        %s283 = sphi %s268, %s268
        %s284 = sphi %s269, %s269
      $region200: #{tpu_custom_call.1} parent=196 // loop_header_branch
        %281 = sbr.rel (%p279) target = $region204
      $region201: #{tpu_custom_call.1} parent=196 // loop_body
        %v285 = vld [vmem:[%s283] sm:%s276]
        %286 = vst [vmem:[%s284] sm:%s276] %v285
      $region202: #{tpu_custom_call.1} parent=196 // loop_footer
        %s282 = sadd.s32 1, %s278
      $region203: #{tpu_custom_call.1} parent=196 // loop_footer_branch
        %277 = sbr.rel target = $region199
      $region204: #{tpu_custom_call.1} parent=196 // loop_exit
        _
    $region197: #{tpu_custom_call.1} parent=1 // pred_fallthru
      _
    // Predicated region
    $region216: #{tpu_custom_call.1} parent=1 // pred_check
      _
    $region217: #{tpu_custom_call.1} parent=1 // pred_check_branch
      %303 = sbr.rel (0) target = $region219
    $region218: #{tpu_custom_call.1} parent=1 // pred_region
      %304 = vsyncadd %s270, 16
    $region219: #{tpu_custom_call.1} parent=1 // pred_fallthru
      _
    %s305 = sadd.s32 %s34, 7
    %s306 = sld [smem:[#allocation4 + %s305]]
    %s307 = scalar_lea.vmem [#allocation5], %s306
    %s308 = scalar_lea.vmem [#allocation8], 7
    %s309 = scalar_lea.sflag [#allocation2], 7
    // Predicated region
    $region220: #{tpu_custom_call.1} parent=1 // pred_check
      _
    $region221: #{tpu_custom_call.1} parent=1 // pred_check_branch
      %311 = sbr.rel target = $region223
    $region222: #{tpu_custom_call.1} parent=1 // pred_region
      // Predicated region
      $region235: #{tpu_custom_call.1} parent=222 // pred_check
        _
      $region236: #{tpu_custom_call.1} parent=222 // pred_check_branch
        %327 = sbr.rel (0) target = $region238
      $region237: #{tpu_custom_call.1} parent=222 // pred_region
        %s329 = ssub.s32 2, 1
        loop: start=0, step=1, limit=1
        $region239: #{tpu_custom_call.1} parent=237 // loop_pre_header
          _
        $region240: #{tpu_custom_call.1} parent=237 // loop_header
          %s331 = sphi 0, %s335
          %p332 = scmp.ge.s32.totalorder %s331, 1
          %s336 = sphi %s307, %s307
          %s337 = sphi %s308, %s308
        $region241: #{tpu_custom_call.1} parent=237 // loop_header_branch
          %334 = sbr.rel (%p332) target = $region245
        $region242: #{tpu_custom_call.1} parent=237 // loop_body
          %v338 = vld [vmem:[%s336] sm:%s329]
          %339 = vst [vmem:[%s337] sm:%s329] %v338
        $region243: #{tpu_custom_call.1} parent=237 // loop_footer
          %s335 = sadd.s32 1, %s331
        $region244: #{tpu_custom_call.1} parent=237 // loop_footer_branch
          %330 = sbr.rel target = $region240
        $region245: #{tpu_custom_call.1} parent=237 // loop_exit
          _
      $region238: #{tpu_custom_call.1} parent=222 // pred_fallthru
        _
    $region223: #{tpu_custom_call.1} parent=1 // pred_fallthru
      _
    // Predicated region
    $region224: #{tpu_custom_call.1} parent=1 // pred_check
      _
    $region225: #{tpu_custom_call.1} parent=1 // pred_check_branch
      %313 = sbr.rel (0) target = $region227
    $region226: #{tpu_custom_call.1} parent=1 // pred_region
      %s315 = ssub.s32 2, 1
      loop: start=0, step=1, limit=1
      $region228: #{tpu_custom_call.1} parent=226 // loop_pre_header
        _
      $region229: #{tpu_custom_call.1} parent=226 // loop_header
        %s317 = sphi 0, %s321
        %p318 = scmp.ge.s32.totalorder %s317, 1
        %s322 = sphi %s307, %s307
        %s323 = sphi %s308, %s308
      $region230: #{tpu_custom_call.1} parent=226 // loop_header_branch
        %320 = sbr.rel (%p318) target = $region234
      $region231: #{tpu_custom_call.1} parent=226 // loop_body
        %v324 = vld [vmem:[%s322] sm:%s315]
        %325 = vst [vmem:[%s323] sm:%s315] %v324
      $region232: #{tpu_custom_call.1} parent=226 // loop_footer
        %s321 = sadd.s32 1, %s317
      $region233: #{tpu_custom_call.1} parent=226 // loop_footer_branch
        %316 = sbr.rel target = $region229
      $region234: #{tpu_custom_call.1} parent=226 // loop_exit
        _
    $region227: #{tpu_custom_call.1} parent=1 // pred_fallthru
      _
    // Predicated region
    $region246: #{tpu_custom_call.1} parent=1 // pred_check
      _
    $region247: #{tpu_custom_call.1} parent=1 // pred_check_branch
      %342 = sbr.rel (0) target = $region249
    $region248: #{tpu_custom_call.1} parent=1 // pred_region
      %343 = vsyncadd %s309, 16
    $region249: #{tpu_custom_call.1} parent=1 // pred_fallthru
      _
    %s344 = sadd.s32 %s34, 8
    %s345 = sld [smem:[#allocation4 + %s344]]
    %s346 = scalar_lea.vmem [#allocation5], %s345
    %s347 = scalar_lea.vmem [#allocation8], 8
    %s348 = scalar_lea.sflag [#allocation2], 8
    // Predicated region
    $region250: #{tpu_custom_call.1} parent=1 // pred_check
      _
    $region251: #{tpu_custom_call.1} parent=1 // pred_check_branch
      %350 = sbr.rel target = $region253
    $region252: #{tpu_custom_call.1} parent=1 // pred_region
      // Predicated region
      $region265: #{tpu_custom_call.1} parent=252 // pred_check
        _
      $region266: #{tpu_custom_call.1} parent=252 // pred_check_branch
        %366 = sbr.rel (0) target = $region268
      $region267: #{tpu_custom_call.1} parent=252 // pred_region
        %s368 = ssub.s32 2, 1
        loop: start=0, step=1, limit=1
        $region269: #{tpu_custom_call.1} parent=267 // loop_pre_header
          _
        $region270: #{tpu_custom_call.1} parent=267 // loop_header
          %s370 = sphi 0, %s374
          %p371 = scmp.ge.s32.totalorder %s370, 1
          %s375 = sphi %s346, %s346
          %s376 = sphi %s347, %s347
        $region271: #{tpu_custom_call.1} parent=267 // loop_header_branch
          %373 = sbr.rel (%p371) target = $region275
        $region272: #{tpu_custom_call.1} parent=267 // loop_body
          %v377 = vld [vmem:[%s375] sm:%s368]
          %378 = vst [vmem:[%s376] sm:%s368] %v377
        $region273: #{tpu_custom_call.1} parent=267 // loop_footer
          %s374 = sadd.s32 1, %s370
        $region274: #{tpu_custom_call.1} parent=267 // loop_footer_branch
          %369 = sbr.rel target = $region270
        $region275: #{tpu_custom_call.1} parent=267 // loop_exit
          _
      $region268: #{tpu_custom_call.1} parent=252 // pred_fallthru
        _
    $region253: #{tpu_custom_call.1} parent=1 // pred_fallthru
      _
    // Predicated region
    $region254: #{tpu_custom_call.1} parent=1 // pred_check
      _
    $region255: #{tpu_custom_call.1} parent=1 // pred_check_branch
      %352 = sbr.rel (0) target = $region257
    $region256: #{tpu_custom_call.1} parent=1 // pred_region
      %s354 = ssub.s32 2, 1
      loop: start=0, step=1, limit=1
      $region258: #{tpu_custom_call.1} parent=256 // loop_pre_header
        _
      $region259: #{tpu_custom_call.1} parent=256 // loop_header
        %s356 = sphi 0, %s360
        %p357 = scmp.ge.s32.totalorder %s356, 1
        %s361 = sphi %s346, %s346
        %s362 = sphi %s347, %s347
      $region260: #{tpu_custom_call.1} parent=256 // loop_header_branch
        %359 = sbr.rel (%p357) target = $region264
      $region261: #{tpu_custom_call.1} parent=256 // loop_body
        %v363 = vld [vmem:[%s361] sm:%s354]
        %364 = vst [vmem:[%s362] sm:%s354] %v363
      $region262: #{tpu_custom_call.1} parent=256 // loop_footer
        %s360 = sadd.s32 1, %s356
      $region263: #{tpu_custom_call.1} parent=256 // loop_footer_branch
        %355 = sbr.rel target = $region259
      $region264: #{tpu_custom_call.1} parent=256 // loop_exit
        _
    $region257: #{tpu_custom_call.1} parent=1 // pred_fallthru
      _
    // Predicated region
    $region276: #{tpu_custom_call.1} parent=1 // pred_check
      _
    $region277: #{tpu_custom_call.1} parent=1 // pred_check_branch
      %381 = sbr.rel (0) target = $region279
    $region278: #{tpu_custom_call.1} parent=1 // pred_region
      %382 = vsyncadd %s348, 16
    $region279: #{tpu_custom_call.1} parent=1 // pred_fallthru
      _
    %s383 = sadd.s32 %s34, 9
    %s384 = sld [smem:[#allocation4 + %s383]]
    %s385 = scalar_lea.vmem [#allocation5], %s384
    %s386 = scalar_lea.vmem [#allocation8], 9
    %s387 = scalar_lea.sflag [#allocation2], 9
    // Predicated region
    $region280: #{tpu_custom_call.1} parent=1 // pred_check
      _
    $region281: #{tpu_custom_call.1} parent=1 // pred_check_branch
      %389 = sbr.rel target = $region283
    $region282: #{tpu_custom_call.1} parent=1 // pred_region
      // Predicated region
      $region295: #{tpu_custom_call.1} parent=282 // pred_check
        _
      $region296: #{tpu_custom_call.1} parent=282 // pred_check_branch
        %405 = sbr.rel (0) target = $region298
      $region297: #{tpu_custom_call.1} parent=282 // pred_region
        %s407 = ssub.s32 2, 1
        loop: start=0, step=1, limit=1
        $region299: #{tpu_custom_call.1} parent=297 // loop_pre_header
          _
        $region300: #{tpu_custom_call.1} parent=297 // loop_header
          %s409 = sphi 0, %s413
          %p410 = scmp.ge.s32.totalorder %s409, 1
          %s414 = sphi %s385, %s385
          %s415 = sphi %s386, %s386
        $region301: #{tpu_custom_call.1} parent=297 // loop_header_branch
          %412 = sbr.rel (%p410) target = $region305
        $region302: #{tpu_custom_call.1} parent=297 // loop_body
          %v416 = vld [vmem:[%s414] sm:%s407]
          %417 = vst [vmem:[%s415] sm:%s407] %v416
        $region303: #{tpu_custom_call.1} parent=297 // loop_footer
          %s413 = sadd.s32 1, %s409
        $region304: #{tpu_custom_call.1} parent=297 // loop_footer_branch
          %408 = sbr.rel target = $region300
        $region305: #{tpu_custom_call.1} parent=297 // loop_exit
          _
      $region298: #{tpu_custom_call.1} parent=282 // pred_fallthru
        _
    $region283: #{tpu_custom_call.1} parent=1 // pred_fallthru
      _
    // Predicated region
    $region284: #{tpu_custom_call.1} parent=1 // pred_check
      _
    $region285: #{tpu_custom_call.1} parent=1 // pred_check_branch
      %391 = sbr.rel (0) target = $region287
    $region286: #{tpu_custom_call.1} parent=1 // pred_region
      %s393 = ssub.s32 2, 1
      loop: start=0, step=1, limit=1
      $region288: #{tpu_custom_call.1} parent=286 // loop_pre_header
        _
      $region289: #{tpu_custom_call.1} parent=286 // loop_header
        %s395 = sphi 0, %s399
        %p396 = scmp.ge.s32.totalorder %s395, 1
        %s400 = sphi %s385, %s385
        %s401 = sphi %s386, %s386
      $region290: #{tpu_custom_call.1} parent=286 // loop_header_branch
        %398 = sbr.rel (%p396) target = $region294
      $region291: #{tpu_custom_call.1} parent=286 // loop_body
        %v402 = vld [vmem:[%s400] sm:%s393]
        %403 = vst [vmem:[%s401] sm:%s393] %v402
      $region292: #{tpu_custom_call.1} parent=286 // loop_footer
        %s399 = sadd.s32 1, %s395
      $region293: #{tpu_custom_call.1} parent=286 // loop_footer_branch
        %394 = sbr.rel target = $region289
      $region294: #{tpu_custom_call.1} parent=286 // loop_exit
        _
    $region287: #{tpu_custom_call.1} parent=1 // pred_fallthru
      _
    // Predicated region
    $region306: #{tpu_custom_call.1} parent=1 // pred_check
      _
    $region307: #{tpu_custom_call.1} parent=1 // pred_check_branch
      %420 = sbr.rel (0) target = $region309
    $region308: #{tpu_custom_call.1} parent=1 // pred_region
      %421 = vsyncadd %s387, 16
    $region309: #{tpu_custom_call.1} parent=1 // pred_fallthru
      _
    %s422 = sadd.s32 %s34, 10
    %s423 = sld [smem:[#allocation4 + %s422]]
    %s424 = scalar_lea.vmem [#allocation5], %s423
    %s425 = scalar_lea.vmem [#allocation8], 10
    %s426 = scalar_lea.sflag [#allocation2], 10
    // Predicated region
    $region310: #{tpu_custom_call.1} parent=1 // pred_check
      _
    $region311: #{tpu_custom_call.1} parent=1 // pred_check_branch
      %428 = sbr.rel target = $region313
    $region312: #{tpu_custom_call.1} parent=1 // pred_region
      // Predicated region
      $region325: #{tpu_custom_call.1} parent=312 // pred_check
        _
      $region326: #{tpu_custom_call.1} parent=312 // pred_check_branch
        %444 = sbr.rel (0) target = $region328
      $region327: #{tpu_custom_call.1} parent=312 // pred_region
        %s446 = ssub.s32 2, 1
        loop: start=0, step=1, limit=1
        $region329: #{tpu_custom_call.1} parent=327 // loop_pre_header
          _
        $region330: #{tpu_custom_call.1} parent=327 // loop_header
          %s448 = sphi 0, %s452
          %p449 = scmp.ge.s32.totalorder %s448, 1
          %s453 = sphi %s424, %s424
          %s454 = sphi %s425, %s425
        $region331: #{tpu_custom_call.1} parent=327 // loop_header_branch
          %451 = sbr.rel (%p449) target = $region335
        $region332: #{tpu_custom_call.1} parent=327 // loop_body
          %v455 = vld [vmem:[%s453] sm:%s446]
          %456 = vst [vmem:[%s454] sm:%s446] %v455
        $region333: #{tpu_custom_call.1} parent=327 // loop_footer
          %s452 = sadd.s32 1, %s448
        $region334: #{tpu_custom_call.1} parent=327 // loop_footer_branch
          %447 = sbr.rel target = $region330
        $region335: #{tpu_custom_call.1} parent=327 // loop_exit
          _
      $region328: #{tpu_custom_call.1} parent=312 // pred_fallthru
        _
    $region313: #{tpu_custom_call.1} parent=1 // pred_fallthru
      _
    // Predicated region
    $region314: #{tpu_custom_call.1} parent=1 // pred_check
      _
    $region315: #{tpu_custom_call.1} parent=1 // pred_check_branch
      %430 = sbr.rel (0) target = $region317
    $region316: #{tpu_custom_call.1} parent=1 // pred_region
      %s432 = ssub.s32 2, 1
      loop: start=0, step=1, limit=1
      $region318: #{tpu_custom_call.1} parent=316 // loop_pre_header
        _
      $region319: #{tpu_custom_call.1} parent=316 // loop_header
        %s434 = sphi 0, %s438
        %p435 = scmp.ge.s32.totalorder %s434, 1
        %s439 = sphi %s424, %s424
        %s440 = sphi %s425, %s425
      $region320: #{tpu_custom_call.1} parent=316 // loop_header_branch
        %437 = sbr.rel (%p435) target = $region324
      $region321: #{tpu_custom_call.1} parent=316 // loop_body
        %v441 = vld [vmem:[%s439] sm:%s432]
        %442 = vst [vmem:[%s440] sm:%s432] %v441
      $region322: #{tpu_custom_call.1} parent=316 // loop_footer
        %s438 = sadd.s32 1, %s434
      $region323: #{tpu_custom_call.1} parent=316 // loop_footer_branch
        %433 = sbr.rel target = $region319
      $region324: #{tpu_custom_call.1} parent=316 // loop_exit
        _
    $region317: #{tpu_custom_call.1} parent=1 // pred_fallthru
      _
    // Predicated region
    $region336: #{tpu_custom_call.1} parent=1 // pred_check
      _
    $region337: #{tpu_custom_call.1} parent=1 // pred_check_branch
      %459 = sbr.rel (0) target = $region339
    $region338: #{tpu_custom_call.1} parent=1 // pred_region
      %460 = vsyncadd %s426, 16
    $region339: #{tpu_custom_call.1} parent=1 // pred_fallthru
      _
    %s461 = sadd.s32 %s34, 11
    %s462 = sld [smem:[#allocation4 + %s461]]
    %s463 = scalar_lea.vmem [#allocation5], %s462
    %s464 = scalar_lea.vmem [#allocation8], 11
    %s465 = scalar_lea.sflag [#allocation2], 11
    // Predicated region
    $region340: #{tpu_custom_call.1} parent=1 // pred_check
      _
    $region341: #{tpu_custom_call.1} parent=1 // pred_check_branch
      %467 = sbr.rel target = $region343
    $region342: #{tpu_custom_call.1} parent=1 // pred_region
      // Predicated region
      $region355: #{tpu_custom_call.1} parent=342 // pred_check
        _
      $region356: #{tpu_custom_call.1} parent=342 // pred_check_branch
        %483 = sbr.rel (0) target = $region358
      $region357: #{tpu_custom_call.1} parent=342 // pred_region
        %s485 = ssub.s32 2, 1
        loop: start=0, step=1, limit=1
        $region359: #{tpu_custom_call.1} parent=357 // loop_pre_header
          _
        $region360: #{tpu_custom_call.1} parent=357 // loop_header
          %s487 = sphi 0, %s491
          %p488 = scmp.ge.s32.totalorder %s487, 1
          %s492 = sphi %s463, %s463
          %s493 = sphi %s464, %s464
        $region361: #{tpu_custom_call.1} parent=357 // loop_header_branch
          %490 = sbr.rel (%p488) target = $region365
        $region362: #{tpu_custom_call.1} parent=357 // loop_body
          %v494 = vld [vmem:[%s492] sm:%s485]
          %495 = vst [vmem:[%s493] sm:%s485] %v494
        $region363: #{tpu_custom_call.1} parent=357 // loop_footer
          %s491 = sadd.s32 1, %s487
        $region364: #{tpu_custom_call.1} parent=357 // loop_footer_branch
          %486 = sbr.rel target = $region360
        $region365: #{tpu_custom_call.1} parent=357 // loop_exit
          _
      $region358: #{tpu_custom_call.1} parent=342 // pred_fallthru
        _
    $region343: #{tpu_custom_call.1} parent=1 // pred_fallthru
      _
    // Predicated region
    $region344: #{tpu_custom_call.1} parent=1 // pred_check
      _
    $region345: #{tpu_custom_call.1} parent=1 // pred_check_branch
      %469 = sbr.rel (0) target = $region347
    $region346: #{tpu_custom_call.1} parent=1 // pred_region
      %s471 = ssub.s32 2, 1
      loop: start=0, step=1, limit=1
      $region348: #{tpu_custom_call.1} parent=346 // loop_pre_header
        _
      $region349: #{tpu_custom_call.1} parent=346 // loop_header
        %s473 = sphi 0, %s477
        %p474 = scmp.ge.s32.totalorder %s473, 1
        %s478 = sphi %s463, %s463
        %s479 = sphi %s464, %s464
      $region350: #{tpu_custom_call.1} parent=346 // loop_header_branch
        %476 = sbr.rel (%p474) target = $region354
      $region351: #{tpu_custom_call.1} parent=346 // loop_body
        %v480 = vld [vmem:[%s478] sm:%s471]
        %481 = vst [vmem:[%s479] sm:%s471] %v480
      $region352: #{tpu_custom_call.1} parent=346 // loop_footer
        %s477 = sadd.s32 1, %s473
      $region353: #{tpu_custom_call.1} parent=346 // loop_footer_branch
        %472 = sbr.rel target = $region349
      $region354: #{tpu_custom_call.1} parent=346 // loop_exit
        _
    $region347: #{tpu_custom_call.1} parent=1 // pred_fallthru
      _
    // Predicated region
    $region366: #{tpu_custom_call.1} parent=1 // pred_check
      _
    $region367: #{tpu_custom_call.1} parent=1 // pred_check_branch
      %498 = sbr.rel (0) target = $region369
    $region368: #{tpu_custom_call.1} parent=1 // pred_region
      %499 = vsyncadd %s465, 16
    $region369: #{tpu_custom_call.1} parent=1 // pred_fallthru
      _
    %s500 = sadd.s32 %s34, 12
    %s501 = sld [smem:[#allocation4 + %s500]]
    %s502 = scalar_lea.vmem [#allocation5], %s501
    %s503 = scalar_lea.vmem [#allocation8], 12
    %s504 = scalar_lea.sflag [#allocation2], 12
    // Predicated region
    $region370: #{tpu_custom_call.1} parent=1 // pred_check
      _
    $region371: #{tpu_custom_call.1} parent=1 // pred_check_branch
      %506 = sbr.rel target = $region373
    $region372: #{tpu_custom_call.1} parent=1 // pred_region
      // Predicated region
      $region385: #{tpu_custom_call.1} parent=372 // pred_check
        _
      $region386: #{tpu_custom_call.1} parent=372 // pred_check_branch
        %522 = sbr.rel (0) target = $region388
      $region387: #{tpu_custom_call.1} parent=372 // pred_region
        %s524 = ssub.s32 2, 1
        loop: start=0, step=1, limit=1
        $region389: #{tpu_custom_call.1} parent=387 // loop_pre_header
          _
        $region390: #{tpu_custom_call.1} parent=387 // loop_header
          %s526 = sphi 0, %s530
          %p527 = scmp.ge.s32.totalorder %s526, 1
          %s531 = sphi %s502, %s502
          %s532 = sphi %s503, %s503
        $region391: #{tpu_custom_call.1} parent=387 // loop_header_branch
          %529 = sbr.rel (%p527) target = $region395
        $region392: #{tpu_custom_call.1} parent=387 // loop_body
          %v533 = vld [vmem:[%s531] sm:%s524]
          %534 = vst [vmem:[%s532] sm:%s524] %v533
        $region393: #{tpu_custom_call.1} parent=387 // loop_footer
          %s530 = sadd.s32 1, %s526
        $region394: #{tpu_custom_call.1} parent=387 // loop_footer_branch
          %525 = sbr.rel target = $region390
        $region395: #{tpu_custom_call.1} parent=387 // loop_exit
          _
      $region388: #{tpu_custom_call.1} parent=372 // pred_fallthru
        _
    $region373: #{tpu_custom_call.1} parent=1 // pred_fallthru
      _
    // Predicated region
    $region374: #{tpu_custom_call.1} parent=1 // pred_check
      _
    $region375: #{tpu_custom_call.1} parent=1 // pred_check_branch
      %508 = sbr.rel (0) target = $region377
    $region376: #{tpu_custom_call.1} parent=1 // pred_region
      %s510 = ssub.s32 2, 1
      loop: start=0, step=1, limit=1
      $region378: #{tpu_custom_call.1} parent=376 // loop_pre_header
        _
      $region379: #{tpu_custom_call.1} parent=376 // loop_header
        %s512 = sphi 0, %s516
        %p513 = scmp.ge.s32.totalorder %s512, 1
        %s517 = sphi %s502, %s502
        %s518 = sphi %s503, %s503
      $region380: #{tpu_custom_call.1} parent=376 // loop_header_branch
        %515 = sbr.rel (%p513) target = $region384
      $region381: #{tpu_custom_call.1} parent=376 // loop_body
        %v519 = vld [vmem:[%s517] sm:%s510]
        %520 = vst [vmem:[%s518] sm:%s510] %v519
      $region382: #{tpu_custom_call.1} parent=376 // loop_footer
        %s516 = sadd.s32 1, %s512
      $region383: #{tpu_custom_call.1} parent=376 // loop_footer_branch
        %511 = sbr.rel target = $region379
      $region384: #{tpu_custom_call.1} parent=376 // loop_exit
        _
    $region377: #{tpu_custom_call.1} parent=1 // pred_fallthru
      _
    // Predicated region
    $region396: #{tpu_custom_call.1} parent=1 // pred_check
      _
    $region397: #{tpu_custom_call.1} parent=1 // pred_check_branch
      %537 = sbr.rel (0) target = $region399
    $region398: #{tpu_custom_call.1} parent=1 // pred_region
      %538 = vsyncadd %s504, 16
    $region399: #{tpu_custom_call.1} parent=1 // pred_fallthru
      _
    %s539 = sadd.s32 %s34, 13
    %s540 = sld [smem:[#allocation4 + %s539]]
    %s541 = scalar_lea.vmem [#allocation5], %s540
    %s542 = scalar_lea.vmem [#allocation8], 13
    %s543 = scalar_lea.sflag [#allocation2], 13
    // Predicated region
    $region400: #{tpu_custom_call.1} parent=1 // pred_check
      _
    $region401: #{tpu_custom_call.1} parent=1 // pred_check_branch
      %545 = sbr.rel target = $region403
    $region402: #{tpu_custom_call.1} parent=1 // pred_region
      // Predicated region
      $region415: #{tpu_custom_call.1} parent=402 // pred_check
        _
      $region416: #{tpu_custom_call.1} parent=402 // pred_check_branch
        %561 = sbr.rel (0) target = $region418
      $region417: #{tpu_custom_call.1} parent=402 // pred_region
        %s563 = ssub.s32 2, 1
        loop: start=0, step=1, limit=1
        $region419: #{tpu_custom_call.1} parent=417 // loop_pre_header
          _
        $region420: #{tpu_custom_call.1} parent=417 // loop_header
          %s565 = sphi 0, %s569
          %p566 = scmp.ge.s32.totalorder %s565, 1
          %s570 = sphi %s541, %s541
          %s571 = sphi %s542, %s542
        $region421: #{tpu_custom_call.1} parent=417 // loop_header_branch
          %568 = sbr.rel (%p566) target = $region425
        $region422: #{tpu_custom_call.1} parent=417 // loop_body
          %v572 = vld [vmem:[%s570] sm:%s563]
          %573 = vst [vmem:[%s571] sm:%s563] %v572
        $region423: #{tpu_custom_call.1} parent=417 // loop_footer
          %s569 = sadd.s32 1, %s565
        $region424: #{tpu_custom_call.1} parent=417 // loop_footer_branch
          %564 = sbr.rel target = $region420
        $region425: #{tpu_custom_call.1} parent=417 // loop_exit
          _
      $region418: #{tpu_custom_call.1} parent=402 // pred_fallthru
        _
    $region403: #{tpu_custom_call.1} parent=1 // pred_fallthru
      _
    // Predicated region
    $region404: #{tpu_custom_call.1} parent=1 // pred_check
      _
    $region405: #{tpu_custom_call.1} parent=1 // pred_check_branch
      %547 = sbr.rel (0) target = $region407
    $region406: #{tpu_custom_call.1} parent=1 // pred_region
      %s549 = ssub.s32 2, 1
      loop: start=0, step=1, limit=1
      $region408: #{tpu_custom_call.1} parent=406 // loop_pre_header
        _
      $region409: #{tpu_custom_call.1} parent=406 // loop_header
        %s551 = sphi 0, %s555
        %p552 = scmp.ge.s32.totalorder %s551, 1
        %s556 = sphi %s541, %s541
        %s557 = sphi %s542, %s542
      $region410: #{tpu_custom_call.1} parent=406 // loop_header_branch
        %554 = sbr.rel (%p552) target = $region414
      $region411: #{tpu_custom_call.1} parent=406 // loop_body
        %v558 = vld [vmem:[%s556] sm:%s549]
        %559 = vst [vmem:[%s557] sm:%s549] %v558
      $region412: #{tpu_custom_call.1} parent=406 // loop_footer
        %s555 = sadd.s32 1, %s551
      $region413: #{tpu_custom_call.1} parent=406 // loop_footer_branch
        %550 = sbr.rel target = $region409
      $region414: #{tpu_custom_call.1} parent=406 // loop_exit
        _
    $region407: #{tpu_custom_call.1} parent=1 // pred_fallthru
      _
    // Predicated region
    $region426: #{tpu_custom_call.1} parent=1 // pred_check
      _
    $region427: #{tpu_custom_call.1} parent=1 // pred_check_branch
      %576 = sbr.rel (0) target = $region429
    $region428: #{tpu_custom_call.1} parent=1 // pred_region
      %577 = vsyncadd %s543, 16
    $region429: #{tpu_custom_call.1} parent=1 // pred_fallthru
      _
    %s578 = sadd.s32 %s34, 14
    %s579 = sld [smem:[#allocation4 + %s578]]
    %s580 = scalar_lea.vmem [#allocation5], %s579
    %s581 = scalar_lea.vmem [#allocation8], 14
    %s582 = scalar_lea.sflag [#allocation2], 14
    // Predicated region
    $region430: #{tpu_custom_call.1} parent=1 // pred_check
      _
    $region431: #{tpu_custom_call.1} parent=1 // pred_check_branch
      %584 = sbr.rel target = $region433
    $region432: #{tpu_custom_call.1} parent=1 // pred_region
      // Predicated region
      $region445: #{tpu_custom_call.1} parent=432 // pred_check
        _
      $region446: #{tpu_custom_call.1} parent=432 // pred_check_branch
        %600 = sbr.rel (0) target = $region448
      $region447: #{tpu_custom_call.1} parent=432 // pred_region
        %s602 = ssub.s32 2, 1
        loop: start=0, step=1, limit=1
        $region449: #{tpu_custom_call.1} parent=447 // loop_pre_header
          _
        $region450: #{tpu_custom_call.1} parent=447 // loop_header
          %s604 = sphi 0, %s608
          %p605 = scmp.ge.s32.totalorder %s604, 1
          %s609 = sphi %s580, %s580
          %s610 = sphi %s581, %s581
        $region451: #{tpu_custom_call.1} parent=447 // loop_header_branch
          %607 = sbr.rel (%p605) target = $region455
        $region452: #{tpu_custom_call.1} parent=447 // loop_body
          %v611 = vld [vmem:[%s609] sm:%s602]
          %612 = vst [vmem:[%s610] sm:%s602] %v611
        $region453: #{tpu_custom_call.1} parent=447 // loop_footer
          %s608 = sadd.s32 1, %s604
        $region454: #{tpu_custom_call.1} parent=447 // loop_footer_branch
          %603 = sbr.rel target = $region450
        $region455: #{tpu_custom_call.1} parent=447 // loop_exit
          _
      $region448: #{tpu_custom_call.1} parent=432 // pred_fallthru
        _
    $region433: #{tpu_custom_call.1} parent=1 // pred_fallthru
      _
    // Predicated region
    $region434: #{tpu_custom_call.1} parent=1 // pred_check
      _
    $region435: #{tpu_custom_call.1} parent=1 // pred_check_branch
      %586 = sbr.rel (0) target = $region437
    $region436: #{tpu_custom_call.1} parent=1 // pred_region
      %s588 = ssub.s32 2, 1
      loop: start=0, step=1, limit=1
      $region438: #{tpu_custom_call.1} parent=436 // loop_pre_header
        _
      $region439: #{tpu_custom_call.1} parent=436 // loop_header
        %s590 = sphi 0, %s594
        %p591 = scmp.ge.s32.totalorder %s590, 1
        %s595 = sphi %s580, %s580
        %s596 = sphi %s581, %s581
      $region440: #{tpu_custom_call.1} parent=436 // loop_header_branch
        %593 = sbr.rel (%p591) target = $region444
      $region441: #{tpu_custom_call.1} parent=436 // loop_body
        %v597 = vld [vmem:[%s595] sm:%s588]
        %598 = vst [vmem:[%s596] sm:%s588] %v597
      $region442: #{tpu_custom_call.1} parent=436 // loop_footer
        %s594 = sadd.s32 1, %s590
      $region443: #{tpu_custom_call.1} parent=436 // loop_footer_branch
        %589 = sbr.rel target = $region439
      $region444: #{tpu_custom_call.1} parent=436 // loop_exit
        _
    $region437: #{tpu_custom_call.1} parent=1 // pred_fallthru
      _
    // Predicated region
    $region456: #{tpu_custom_call.1} parent=1 // pred_check
      _
    $region457: #{tpu_custom_call.1} parent=1 // pred_check_branch
      %615 = sbr.rel (0) target = $region459
    $region458: #{tpu_custom_call.1} parent=1 // pred_region
      %616 = vsyncadd %s582, 16
    $region459: #{tpu_custom_call.1} parent=1 // pred_fallthru
      _
    %s617 = sadd.s32 %s34, 15
    %s618 = sld [smem:[#allocation4 + %s617]]
    %s619 = scalar_lea.vmem [#allocation5], %s618
    %s620 = scalar_lea.vmem [#allocation8], 15
    %s621 = scalar_lea.sflag [#allocation2], 15
    // Predicated region
    $region460: #{tpu_custom_call.1} parent=1 // pred_check
      _
    $region461: #{tpu_custom_call.1} parent=1 // pred_check_branch
      %623 = sbr.rel target = $region463
    $region462: #{tpu_custom_call.1} parent=1 // pred_region
      // Predicated region
      $region475: #{tpu_custom_call.1} parent=462 // pred_check
        _
      $region476: #{tpu_custom_call.1} parent=462 // pred_check_branch
        %639 = sbr.rel (0) target = $region478
      $region477: #{tpu_custom_call.1} parent=462 // pred_region
        %s641 = ssub.s32 2, 1
        loop: start=0, step=1, limit=1
        $region479: #{tpu_custom_call.1} parent=477 // loop_pre_header
          _
        $region480: #{tpu_custom_call.1} parent=477 // loop_header
          %s643 = sphi 0, %s647
          %p644 = scmp.ge.s32.totalorder %s643, 1
          %s648 = sphi %s619, %s619
          %s649 = sphi %s620, %s620
        $region481: #{tpu_custom_call.1} parent=477 // loop_header_branch
          %646 = sbr.rel (%p644) target = $region485
        $region482: #{tpu_custom_call.1} parent=477 // loop_body
          %v650 = vld [vmem:[%s648] sm:%s641]
          %651 = vst [vmem:[%s649] sm:%s641] %v650
        $region483: #{tpu_custom_call.1} parent=477 // loop_footer
          %s647 = sadd.s32 1, %s643
        $region484: #{tpu_custom_call.1} parent=477 // loop_footer_branch
          %642 = sbr.rel target = $region480
        $region485: #{tpu_custom_call.1} parent=477 // loop_exit
          _
      $region478: #{tpu_custom_call.1} parent=462 // pred_fallthru
        _
    $region463: #{tpu_custom_call.1} parent=1 // pred_fallthru
      _
    // Predicated region
    $region464: #{tpu_custom_call.1} parent=1 // pred_check
      _
    $region465: #{tpu_custom_call.1} parent=1 // pred_check_branch
      %625 = sbr.rel (0) target = $region467
    $region466: #{tpu_custom_call.1} parent=1 // pred_region
      %s627 = ssub.s32 2, 1
      loop: start=0, step=1, limit=1
      $region468: #{tpu_custom_call.1} parent=466 // loop_pre_header
        _
      $region469: #{tpu_custom_call.1} parent=466 // loop_header
        %s629 = sphi 0, %s633
        %p630 = scmp.ge.s32.totalorder %s629, 1
        %s634 = sphi %s619, %s619
        %s635 = sphi %s620, %s620
      $region470: #{tpu_custom_call.1} parent=466 // loop_header_branch
        %632 = sbr.rel (%p630) target = $region474
      $region471: #{tpu_custom_call.1} parent=466 // loop_body
        %v636 = vld [vmem:[%s634] sm:%s627]
        %637 = vst [vmem:[%s635] sm:%s627] %v636
      $region472: #{tpu_custom_call.1} parent=466 // loop_footer
        %s633 = sadd.s32 1, %s629
      $region473: #{tpu_custom_call.1} parent=466 // loop_footer_branch
        %628 = sbr.rel target = $region469
      $region474: #{tpu_custom_call.1} parent=466 // loop_exit
        _
    $region467: #{tpu_custom_call.1} parent=1 // pred_fallthru
      _
    // Predicated region
    $region486: #{tpu_custom_call.1} parent=1 // pred_check
      _
    $region487: #{tpu_custom_call.1} parent=1 // pred_check_branch
      %654 = sbr.rel (0) target = $region489
    $region488: #{tpu_custom_call.1} parent=1 // pred_region
      %655 = vsyncadd %s621, 16
    $region489: #{tpu_custom_call.1} parent=1 // pred_fallthru
      _
    loop: start=0, step=1, limit=16
    $region490: #{tpu_custom_call.1} parent=1 // loop_pre_header
      _
    $region491: #{tpu_custom_call.1} parent=1 // loop_header
      %s657 = sphi 0, %s661
      %p658 = scmp.ge.s32.totalorder %s657, 16
    $region492: #{tpu_custom_call.1} parent=1 // loop_header_branch
      %660 = sbr.rel (%p658) target = $region496
    $region493: #{tpu_custom_call.1} parent=1 // loop_body
      %p662 = scmp.lt.s32.totalorder %s657, 0
      %s663 = ssub.s32 0, %s657
      %s664 = scalar_select %p662, %s663, %s657
      %s665 = sand.u32 %s664, 15
      %s666 = ssub.s32 0, %s665
      %s667 = scalar_select %p662, %s666, %s665
      %p668 = scmp.ne.s32.totalorder %s667, 0
      %p669 = scmp.lt.s32.totalorder %s667, 0
      %p670 = pnand %p669, %p668
      %p671 = pneg %p670
      %s672 = sadd.s32 %s667, 16
      %s673 = scalar_select %p671, %s672, %s667
      %s674 = scalar_lea.sflag [#allocation2], %s673
      %676 = dma.done %s674, 16
      %s677 = sadd.s32 %s657, 16
      %p678 = scmp.lt.s32.totalorder %s677, 16
      // Predicated region
      $region497: #{tpu_custom_call.1} parent=493 // pred_check
        %p679 = pneg %p678
      $region498: #{tpu_custom_call.1} parent=493 // pred_check_branch
        %681 = sbr.rel (%p679) target = $region500
      $region499: #{tpu_custom_call.1} parent=493 // pred_region
        %s682 = sadd.s32 %s34, %s677
        %s683 = sld [smem:[#allocation4 + %s682]]
        %p684 = scmp.lt.s32.totalorder %s677, 0
        %s685 = ssub.s32 0, %s677
        %s686 = scalar_select %p684, %s685, %s677
        %s687 = sand.u32 %s686, 15
        %s688 = ssub.s32 0, %s687
        %s689 = scalar_select %p684, %s688, %s687
        %p690 = scmp.ne.s32.totalorder %s689, 0
        %p691 = scmp.lt.s32.totalorder %s689, 0
        %p692 = pnand %p691, %p690
        %p693 = pneg %p692
        %s694 = sadd.s32 %s689, 16
        %s695 = scalar_select %p693, %s694, %s689
        %s696 = scalar_lea.vmem [#allocation5], %s683
        %s697 = scalar_lea.vmem [#allocation8], %s677
        %s698 = scalar_lea.sflag [#allocation2], %s695
        // Predicated region
        $region501: #{tpu_custom_call.1} parent=499 // pred_check
          _
        $region502: #{tpu_custom_call.1} parent=499 // pred_check_branch
          %700 = sbr.rel target = $region504
        $region503: #{tpu_custom_call.1} parent=499 // pred_region
          // Predicated region
          $region516: #{tpu_custom_call.1} parent=503 // pred_check
            _
          $region517: #{tpu_custom_call.1} parent=503 // pred_check_branch
            %716 = sbr.rel (0) target = $region519
          $region518: #{tpu_custom_call.1} parent=503 // pred_region
            %s718 = ssub.s32 2, 1
            loop: start=0, step=1, limit=1
            $region520: #{tpu_custom_call.1} parent=518 // loop_pre_header
              _
            $region521: #{tpu_custom_call.1} parent=518 // loop_header
              %s720 = sphi 0, %s724
              %p721 = scmp.ge.s32.totalorder %s720, 1
              %s725 = sphi %s696, %s696
              %s726 = sphi %s697, %s697
            $region522: #{tpu_custom_call.1} parent=518 // loop_header_branch
              %723 = sbr.rel (%p721) target = $region526
            $region523: #{tpu_custom_call.1} parent=518 // loop_body
              %v727 = vld [vmem:[%s725] sm:%s718]
              %728 = vst [vmem:[%s726] sm:%s718] %v727
            $region524: #{tpu_custom_call.1} parent=518 // loop_footer
              %s724 = sadd.s32 1, %s720
            $region525: #{tpu_custom_call.1} parent=518 // loop_footer_branch
              %719 = sbr.rel target = $region521
            $region526: #{tpu_custom_call.1} parent=518 // loop_exit
              _
          $region519: #{tpu_custom_call.1} parent=503 // pred_fallthru
            _
        $region504: #{tpu_custom_call.1} parent=499 // pred_fallthru
          _
        // Predicated region
        $region505: #{tpu_custom_call.1} parent=499 // pred_check
          _
        $region506: #{tpu_custom_call.1} parent=499 // pred_check_branch
          %702 = sbr.rel (0) target = $region508
        $region507: #{tpu_custom_call.1} parent=499 // pred_region
          %s704 = ssub.s32 2, 1
          loop: start=0, step=1, limit=1
          $region509: #{tpu_custom_call.1} parent=507 // loop_pre_header
            _
          $region510: #{tpu_custom_call.1} parent=507 // loop_header
            %s706 = sphi 0, %s710
            %p707 = scmp.ge.s32.totalorder %s706, 1
            %s711 = sphi %s696, %s696
            %s712 = sphi %s697, %s697
          $region511: #{tpu_custom_call.1} parent=507 // loop_header_branch
            %709 = sbr.rel (%p707) target = $region515
          $region512: #{tpu_custom_call.1} parent=507 // loop_body
            %v713 = vld [vmem:[%s711] sm:%s704]
            %714 = vst [vmem:[%s712] sm:%s704] %v713
          $region513: #{tpu_custom_call.1} parent=507 // loop_footer
            %s710 = sadd.s32 1, %s706
          $region514: #{tpu_custom_call.1} parent=507 // loop_footer_branch
            %705 = sbr.rel target = $region510
          $region515: #{tpu_custom_call.1} parent=507 // loop_exit
            _
        $region508: #{tpu_custom_call.1} parent=499 // pred_fallthru
          _
        // Predicated region
        $region527: #{tpu_custom_call.1} parent=499 // pred_check
          _
        $region528: #{tpu_custom_call.1} parent=499 // pred_check_branch
          %731 = sbr.rel (0) target = $region530
        $region529: #{tpu_custom_call.1} parent=499 // pred_region
          %732 = vsyncadd %s698, 16
        $region530: #{tpu_custom_call.1} parent=499 // pred_fallthru
          _
      $region500: #{tpu_custom_call.1} parent=493 // pred_fallthru
        _
    $region494: #{tpu_custom_call.1} parent=1 // loop_footer
      %s661 = sadd.s32 1, %s657
    $region495: #{tpu_custom_call.1} parent=1 // loop_footer_branch
      %656 = sbr.rel target = $region491
    $region496: #{tpu_custom_call.1} parent=1 // loop_exit
      _
    // Predicated region
    $region531: #{tpu_custom_call.1} parent=1 // pred_check
      _
    $region532: #{tpu_custom_call.1} parent=1 // pred_check_branch
      %734 = sbr.rel (0) target = $region534
    $region533: #{tpu_custom_call.1} parent=1 // pred_region
      %736 = vsyncadd [#allocation7], 0
      %s737 = sshll.u32 [#allocation8], 4
      %s738 = int_to_ptr.vmem [resolvable:$true] %s737
      %s739 = sshll.u32 %s2, 4
      %s740 = int_to_ptr.hbm [resolvable:$true] %s739
      %745 = dma.vmem_to_hbm [thread:$0]  %s738, 256, %s740, [#allocation7], 128, 128, 8
    $region534: #{tpu_custom_call.1} parent=1 // pred_fallthru
      _
    // Predicated region
    $region535: #{tpu_custom_call.1} parent=1 // pred_check
      _
    $region536: #{tpu_custom_call.1} parent=1 // pred_check_branch
      %747 = sbr.rel (0) target = $region538
    $region537: #{tpu_custom_call.1} parent=1 // pred_region
      %749 = dma.done [#allocation7], 256
    $region538: #{tpu_custom_call.1} parent=1 // pred_fallthru
      _
    %750 = vsyncpa [#allocation6], 1
    %751 = vsyncpa [#allocation7], 1
  %752 = vsyncmov [#allocation2]
  %s753 = vpop.sfrf %752
  %p754 = scmp.eq.s32.totalorder %s753, 0
  %p755 = pneg %p754
  %757 = shalt.err (%p755)
  %s758 = scalar_lea.sflag [#allocation2], 1
  %759 = vsyncmov %s758
  %s760 = vpop.sfrf %759
  %p761 = scmp.eq.s32.totalorder %s760, 0
  %p762 = pneg %p761
  %764 = shalt.err (%p762)
  %s765 = scalar_lea.sflag [#allocation2], 2
  %766 = vsyncmov %s765
  %s767 = vpop.sfrf %766
  %p768 = scmp.eq.s32.totalorder %s767, 0
  %p769 = pneg %p768
  %771 = shalt.err (%p769)
  %s772 = scalar_lea.sflag [#allocation2], 3
  %773 = vsyncmov %s772
  %s774 = vpop.sfrf %773
  %p775 = scmp.eq.s32.totalorder %s774, 0
  %p776 = pneg %p775
  %778 = shalt.err (%p776)
  %s779 = scalar_lea.sflag [#allocation2], 4
  %780 = vsyncmov %s779
  %s781 = vpop.sfrf %780
  %p782 = scmp.eq.s32.totalorder %s781, 0
  %p783 = pneg %p782
  %785 = shalt.err (%p783)
  %s786 = scalar_lea.sflag [#allocation2], 5
  %787 = vsyncmov %s786
  %s788 = vpop.sfrf %787
  %p789 = scmp.eq.s32.totalorder %s788, 0
  %p790 = pneg %p789
  %792 = shalt.err (%p790)
  %s793 = scalar_lea.sflag [#allocation2], 6
  %794 = vsyncmov %s793
  %s795 = vpop.sfrf %794
  %p796 = scmp.eq.s32.totalorder %s795, 0
  %p797 = pneg %p796
  %799 = shalt.err (%p797)
  %s800 = scalar_lea.sflag [#allocation2], 7
  %801 = vsyncmov %s800
  %s802 = vpop.sfrf %801
  %p803 = scmp.eq.s32.totalorder %s802, 0
  %p804 = pneg %p803
  %806 = shalt.err (%p804)
  %s807 = scalar_lea.sflag [#allocation2], 8
  %808 = vsyncmov %s807
  %s809 = vpop.sfrf %808
  %p810 = scmp.eq.s32.totalorder %s809, 0
  %p811 = pneg %p810
  %813 = shalt.err (%p811)
  %s814 = scalar_lea.sflag [#allocation2], 9
  %815 = vsyncmov %s814
  %s816 = vpop.sfrf %815
  %p817 = scmp.eq.s32.totalorder %s816, 0
  %p818 = pneg %p817
  %820 = shalt.err (%p818)
  %s821 = scalar_lea.sflag [#allocation2], 10
  %822 = vsyncmov %s821
  %s823 = vpop.sfrf %822
  %p824 = scmp.eq.s32.totalorder %s823, 0
  %p825 = pneg %p824
  %827 = shalt.err (%p825)
  %s828 = scalar_lea.sflag [#allocation2], 11
  %829 = vsyncmov %s828
  %s830 = vpop.sfrf %829
  %p831 = scmp.eq.s32.totalorder %s830, 0
  %p832 = pneg %p831
  %834 = shalt.err (%p832)
  %s835 = scalar_lea.sflag [#allocation2], 12
  %836 = vsyncmov %s835
  %s837 = vpop.sfrf %836
  %p838 = scmp.eq.s32.totalorder %s837, 0
  %p839 = pneg %p838
  %841 = shalt.err (%p839)
  %s842 = scalar_lea.sflag [#allocation2], 13
  %843 = vsyncmov %s842
  %s844 = vpop.sfrf %843
  %p845 = scmp.eq.s32.totalorder %s844, 0
  %p846 = pneg %p845
  %848 = shalt.err (%p846)
  %s849 = scalar_lea.sflag [#allocation2], 14
  %850 = vsyncmov %s849
  %s851 = vpop.sfrf %850
  %p852 = scmp.eq.s32.totalorder %s851, 0
  %p853 = pneg %p852
  %855 = shalt.err (%p853)
  %s856 = scalar_lea.sflag [#allocation2], 15
  %857 = vsyncmov %s856
  %s858 = vpop.sfrf %857
  %p859 = scmp.eq.s32.totalorder %s858, 0
  %p860 = pneg %p859
  %862 = shalt.err (%p860)

</llo_original>
